<compile_context>
chip_gen: v5e
topology: v5e:2x2
jax: 0.10.0
libtpu: 0.0.40
codegen_flags: <defaults>
</compile_context>

<pallas_src>
import jax
import jax.numpy as jnp
from jax.experimental import pallas as pl
from jax.experimental.pallas import tpu as pltpu

INPUT_SIZE = 7     # conv1 in-channels
SEQ = 8            # conv length; 64 * SEQ = 512 = LSTM input_size
HIDDEN = 64
H4 = 4 * HIDDEN    # 256 = one gate slab (4 directions x 64)
BATCH = 72         # matches the module's hard-coded batch_size


def _round_up(n, m):
    return ((n + m - 1) // m) * m


# ----------------------------------------------------------------------------
# Pallas kernel: conv1d(k=1)+ReLU, zero-state bi-LSTM step (x2), fused heads.
# ----------------------------------------------------------------------------
def sharelayer_kernel(x_ref, wc_ref, bc_ref, wih_ref, bih_ref,
                      wout_ref, bout_ref, out_ref):
    # conv1 + ReLU as one matmul against the host-built block-diagonal weight;
    # the result lands directly as the (TB, 512) LSTM-input slab with row
    # layout t*64 + c_out (W_ih rows were permuted to match at pack time).
    x = x_ref[...].astype(jnp.bfloat16)
    conv = jnp.dot(x, wc_ref[...], preferred_element_type=jnp.float32)
    conv = jnp.maximum(conv + bc_ref[...], 0.0)
    # Dropout(0.5) after the conv is identity in eval mode.

    # All four LSTM directions' gates in one matmul. Forget-gate columns were
    # dropped at pack time (c0 == 0); b_hh is folded into the bias (h0 == 0).
    gates = jnp.dot(conv.astype(jnp.bfloat16), wih_ref[...],
                    preferred_element_type=jnp.float32) + bih_ref[...]

    # Gate columns are packed as three 128-aligned slabs: [i | g | o],
    # each slab = [ff | fr | sf | sr] x 64.
    i_g = jax.nn.sigmoid(gates[:, 0:H4])
    g_g = jnp.tanh(gates[:, H4:2 * H4])
    o_g = jax.nn.sigmoid(gates[:, 2 * H4:3 * H4])
    h = o_g * jnp.tanh(i_g * g_g)          # (TB, 256) = [h_ff | h_fr | h_sf | h_sr]
    # Dropout(0.3) on the LSTM outputs is identity in eval mode.

    # linearf(+linearf1) / linears(+linears1) merged into one block-diagonal
    # (256, 2) head -> a single lane-dense output writeback.
    out_ref[...] = (jnp.dot(h, wout_ref[...], preferred_element_type=jnp.float32)
                    + bout_ref[...])


def sharelayer_forward(x, kernel_params, *, tile_b=128):
    """x: (B, SEQ, INPUT_SIZE) float32 (batch_first layout, pre-transpose)."""
    wc, bc, wih, bih, wout, bout = kernel_params
    B = x.shape[0]
    x_flat = x.reshape(B, SEQ * INPUT_SIZE)          # row layout t*7 + c_in

    TB = min(tile_b, _round_up(B, 8))
    Bp = _round_up(B, TB)
    if Bp != B:
        x_flat = jnp.pad(x_flat, ((0, Bp - B), (0, 0)))

    # Weights get a constant index_map -> DMA'd once, VMEM-resident across the
    # batch grid; only x / out tiles stream.
    const = lambda shape: pl.BlockSpec(shape, lambda i: (0, 0))

    out = pl.pallas_call(
        sharelayer_kernel,
        out_shape=jax.ShapeDtypeStruct((Bp, 2), jnp.float32),
        grid_spec=pltpu.PrefetchScalarGridSpec(
            num_scalar_prefetch=0,
            grid=(Bp // TB,),
            in_specs=[
                pl.BlockSpec((TB, SEQ * INPUT_SIZE), lambda i: (i, 0)),  # x
                const(wc.shape), const(bc.shape),
                const(wih.shape), const(bih.shape),
                const(wout.shape), const(bout.shape),
            ],
            out_specs=pl.BlockSpec((TB, 2), lambda i: (i, 0)),
        ),
        compiler_params=pltpu.CompilerParams(
            dimension_semantics=("parallel",)),
    )(x_flat, wc, bc, wih, bih, wout, bout)

    return out[:B, 0:1], out[:B, 1:2]


# ----------------------------------------------------------------------------
# Deterministic parameter construction (synthetic weights, PyTorch shapes).
# ----------------------------------------------------------------------------
def make_params():
    key = jax.random.PRNGKey(0)
    ks = iter(jax.random.split(key, 32))

    def u(shape, scale=0.1):
        return jax.random.uniform(next(ks), shape, jnp.float32, -scale, scale)

    p = {}
    p["W1"] = u((64, INPUT_SIZE))                 # Conv1d(7->64, k=1) weight
    p["b1"] = u((64,))
    for name in ("ff", "fr", "sf", "sr"):         # bilstmf fwd/rev, bilstms fwd/rev
        p[f"Wih_{name}"] = u((4 * HIDDEN, HIDDEN * SEQ))    # (256, 512)
        p[f"bih_{name}"] = u((4 * HIDDEN,))
        p[f"bhh_{name}"] = u((4 * HIDDEN,))
        # W_hh exists in the module but multiplies the zero initial hidden state.
    p["Wlf"] = u((1, 2 * HIDDEN)); p["blf"] = u((1,))
    p["Wls"] = u((1, 2 * HIDDEN)); p["bls"] = u((1,))
    p["Wlf1"] = u((1, 1)); p["blf1"] = u((1,))
    p["Wls1"] = u((1, 1)); p["bls1"] = u((1,))
    return p


def pack_kernel_params(p):
    S, C, H = SEQ, INPUT_SIZE, HIDDEN
    f32 = jnp.float32

    # Block-diagonal conv weight: wc[t*C + c_in, t*H + c_out] = W1[c_out, c_in].
    w1t = p["W1"].T                                            # (7, 64)
    eye = jnp.eye(S, dtype=f32)
    wc = (eye[:, None, :, None] * w1t[None, :, None, :]).reshape(S * C, S * H)
    bc = jnp.tile(p["b1"], S)[None, :]                         # (1, 512)

    # Permute W_ih so its row index is t*64 + c_out (matches the conv slab)
    # instead of PyTorch's channel-major flatten index c_out*S + t.
    def perm_ih(W):                                            # (256, 512) -> (512, 256)
        return jnp.transpose(W.reshape(4 * H, H, S), (2, 1, 0)).reshape(S * H, 4 * H)

    dirs = ("ff", "fr", "sf", "sr")
    Wd = {d: perm_ih(p[f"Wih_{d}"]) for d in dirs}
    bd = {d: p[f"bih_{d}"] + p[f"bhh_{d}"] for d in dirs}      # fold b_hh (h0 == 0)

    # Gate slabs [i | g | o]; forget gate dropped entirely (c0 == 0).
    cols_w, cols_b = [], []
    for lo in (0, 2 * H, 3 * H):                               # i, g, o row blocks
        for d in dirs:
            cols_w.append(Wd[d][:, lo:lo + H])
            cols_b.append(bd[d][lo:lo + H])
    wih = jnp.concatenate(cols_w, axis=1)                      # (512, 768)
    bih = jnp.concatenate(cols_b)[None, :]                     # (1, 768)

    # Fuse linearf1/linears1 into the heads; merge heads block-diagonally.
    sf0, sf1 = p["Wlf1"][0, 0], p["blf1"][0]
    ss0, ss1 = p["Wls1"][0, 0], p["bls1"][0]
    wout = jnp.zeros((4 * H, 2), f32)
    wout = wout.at[0:2 * H, 0].set(p["Wlf"][0] * sf0)
    wout = wout.at[2 * H:4 * H, 1].set(p["Wls"][0] * ss0)
    bout = jnp.array([[p["blf"][0] * sf0 + sf1,
                       p["bls"][0] * ss0 + ss1]], dtype=f32)

    # Large weights -> bf16 (halves HBM->VMEM bytes; MXU accumulates in f32).
    return (wc.astype(jnp.bfloat16), bc,
            wih.astype(jnp.bfloat16), bih,
            wout, bout)


# ----------------------------------------------------------------------------
# Pure-JAX reference mirroring the PyTorch forward exactly (eval mode, f32).
# ----------------------------------------------------------------------------
def reference_forward(x, p):
    B = x.shape[0]
    conv = jnp.einsum("bsc,oc->bos", x, p["W1"]) + p["b1"][None, :, None]  # (B,64,S)
    conv = jnp.maximum(conv, 0.0)
    lstm_in = conv.reshape(B, -1)                                          # (B, 512)

    def direction(Wih, bih, bhh):
        g = lstm_in @ Wih.T + bih + bhh
        i = jax.nn.sigmoid(g[:, 0:64])
        gg = jnp.tanh(g[:, 128:192])
        o = jax.nn.sigmoid(g[:, 192:256])
        return o * jnp.tanh(i * gg)

    hf = jnp.concatenate([direction(p["Wih_ff"], p["bih_ff"], p["bhh_ff"]),
                          direction(p["Wih_fr"], p["bih_fr"], p["bhh_fr"])], -1)
    hs = jnp.concatenate([direction(p["Wih_sf"], p["bih_sf"], p["bhh_sf"]),
                          direction(p["Wih_sr"], p["bih_sr"], p["bhh_sr"])], -1)
    predf = hf @ p["Wlf"].T + p["blf"]
    preds = hs @ p["Wls"].T + p["bls"]
    predf = predf @ p["Wlf1"].T + p["blf1"]
    preds = preds @ p["Wls1"].T + p["bls1"]
    return predf, preds


if __name__ == "__main__":
    params = make_params()
    kernel_params = pack_kernel_params(params)

    x = jax.random.normal(jax.random.PRNGKey(0), (BATCH, SEQ, INPUT_SIZE),
                          dtype=jnp.float32)

    predf, preds = sharelayer_forward(x, kernel_params)
    predf = jax.block_until_ready(predf)
    preds = jax.block_until_ready(preds)

    ref_f, ref_s = reference_forward(x, params)
    assert predf.shape == (BATCH, 1) and preds.shape == (BATCH, 1)
    # bf16 weights -> loosened tolerance (expected quantization error, not a bug).
    assert jnp.allclose(predf, ref_f, atol=2e-2, rtol=2e-2), \
        float(jnp.max(jnp.abs(predf - ref_f)))
    assert jnp.allclose(preds, ref_s, atol=2e-2, rtol=2e-2), \
        float(jnp.max(jnp.abs(preds - ref_s)))

    print("KERNEL_OK")
</pallas_src>

<mosaic_0001>
module attributes {stable_mosaic.version = 11 : i64} {
  func.func @sharelayer_kernel(%arg0: i32, %arg1: memref<72x56xf32, #tpu.memory_space<vmem>>, %arg2: memref<56x512xbf16, #tpu.memory_space<vmem>>, %arg3: memref<1x512xf32, #tpu.memory_space<vmem>>, %arg4: memref<512x768xbf16, #tpu.memory_space<vmem>>, %arg5: memref<1x768xf32, #tpu.memory_space<vmem>>, %arg6: memref<256x2xf32, #tpu.memory_space<vmem>>, %arg7: memref<1x2xf32, #tpu.memory_space<vmem>>, %arg8: memref<72x2xf32, #tpu.memory_space<vmem>>) attributes {dimension_semantics = [#tpu.dimension_semantics<parallel>], iteration_bounds = array<i64: 1>, scalar_prefetch = 0 : i64, scratch_operands = 0 : i64, tpu.core_type = #tpu.core_type<tc>, window_params = [{transform_indices = @transform_0, window_bounds = array<i64: 72, 56>}, {pipeline_mode = #tpu.pipeline_mode<synchronous>, transform_indices = @transform_1, window_bounds = array<i64: 56, 512>}, {pipeline_mode = #tpu.pipeline_mode<synchronous>, transform_indices = @transform_2, window_bounds = array<i64: 1, 512>}, {pipeline_mode = #tpu.pipeline_mode<synchronous>, transform_indices = @transform_3, window_bounds = array<i64: 512, 768>}, {pipeline_mode = #tpu.pipeline_mode<synchronous>, transform_indices = @transform_4, window_bounds = array<i64: 1, 768>}, {pipeline_mode = #tpu.pipeline_mode<synchronous>, transform_indices = @transform_5, window_bounds = array<i64: 256, 2>}, {pipeline_mode = #tpu.pipeline_mode<synchronous>, transform_indices = @transform_6, window_bounds = array<i64: 1, 2>}, {transform_indices = @transform_7, window_bounds = array<i64: 72, 2>}]} {
    %c0 = arith.constant 0 : index
    %c0_0 = arith.constant 0 : index
    %0 = vector.load %arg1[%c0, %c0_0] : memref<72x56xf32, #tpu.memory_space<vmem>>, vector<72x56xf32>
    %1 = arith.truncf %0 : vector<72x56xf32> to vector<72x56xbf16>
    %c0_1 = arith.constant 0 : index
    %c0_2 = arith.constant 0 : index
    %2 = vector.load %arg2[%c0_1, %c0_2] : memref<56x512xbf16, #tpu.memory_space<vmem>>, vector<56x512xbf16>
    %cst = arith.constant dense<0.000000e+00> : vector<72x512xf32>
    %3 = tpu.matmul %1, %2, %cst {dimension_numbers = #tpu.dot_dimension_numbers<[1], [0], [0], [1], [0, 0, 1, 1], [], []>} : vector<72x56xbf16>, vector<56x512xbf16>, vector<72x512xf32> -> vector<72x512xf32>
    %c0_3 = arith.constant 0 : index
    %c0_4 = arith.constant 0 : index
    %4 = vector.load %arg3[%c0_3, %c0_4] : memref<1x512xf32, #tpu.memory_space<vmem>>, vector<1x512xf32>
    %5 = vector.broadcast %4 : vector<1x512xf32> to vector<72x512xf32>
    %6 = arith.addf %3, %5 : vector<72x512xf32>
    %cst_5 = arith.constant 0.000000e+00 : f32
    %7 = vector.broadcast %cst_5 : f32 to vector<72x512xf32>
    %8 = arith.maximumf %6, %7 : vector<72x512xf32>
    %9 = arith.truncf %8 : vector<72x512xf32> to vector<72x512xbf16>
    %c0_6 = arith.constant 0 : index
    %c0_7 = arith.constant 0 : index
    %10 = vector.load %arg4[%c0_6, %c0_7] : memref<512x768xbf16, #tpu.memory_space<vmem>>, vector<512x768xbf16>
    %cst_8 = arith.constant dense<0.000000e+00> : vector<72x768xf32>
    %11 = tpu.matmul %9, %10, %cst_8 {dimension_numbers = #tpu.dot_dimension_numbers<[1], [0], [0], [1], [0, 0, 1, 1], [], []>} : vector<72x512xbf16>, vector<512x768xbf16>, vector<72x768xf32> -> vector<72x768xf32>
    %c0_9 = arith.constant 0 : index
    %c0_10 = arith.constant 0 : index
    %12 = vector.load %arg5[%c0_9, %c0_10] : memref<1x768xf32, #tpu.memory_space<vmem>>, vector<1x768xf32>
    %13 = vector.broadcast %12 : vector<1x768xf32> to vector<72x768xf32>
    %14 = arith.addf %11, %13 : vector<72x768xf32>
    %15 = vector.extract_strided_slice %14 {offsets = [0, 0], sizes = [72, 256], strides = [1, 1]} : vector<72x768xf32> to vector<72x256xf32>
    %16 = arith.negf %15 : vector<72x256xf32>
    %17 = math.exp %16 : vector<72x256xf32>
    %cst_11 = arith.constant 1.000000e+00 : f32
    %18 = vector.broadcast %cst_11 : f32 to vector<72x256xf32>
    %19 = arith.addf %18, %17 : vector<72x256xf32>
    %20 = arith.divf %18, %19 : vector<72x256xf32>
    %21 = vector.extract_strided_slice %14 {offsets = [0, 256], sizes = [72, 256], strides = [1, 1]} : vector<72x768xf32> to vector<72x256xf32>
    %22 = math.tanh %21 : vector<72x256xf32>
    %23 = vector.extract_strided_slice %14 {offsets = [0, 512], sizes = [72, 256], strides = [1, 1]} : vector<72x768xf32> to vector<72x256xf32>
    %24 = arith.negf %23 : vector<72x256xf32>
    %25 = math.exp %24 : vector<72x256xf32>
    %cst_12 = arith.constant 1.000000e+00 : f32
    %26 = vector.broadcast %cst_12 : f32 to vector<72x256xf32>
    %27 = arith.addf %26, %25 : vector<72x256xf32>
    %28 = arith.divf %26, %27 : vector<72x256xf32>
    %29 = arith.mulf %20, %22 : vector<72x256xf32>
    %30 = math.tanh %29 : vector<72x256xf32>
    %31 = arith.mulf %28, %30 : vector<72x256xf32>
    %c0_13 = arith.constant 0 : index
    %c0_14 = arith.constant 0 : index
    %32 = vector.load %arg6[%c0_13, %c0_14] : memref<256x2xf32, #tpu.memory_space<vmem>>, vector<256x2xf32>
    %cst_15 = arith.constant dense<0.000000e+00> : vector<72x2xf32>
    %33 = tpu.matmul %31, %32, %cst_15 {dimension_numbers = #tpu.dot_dimension_numbers<[1], [0], [0], [1], [0, 0, 1, 1], [], []>} : vector<72x256xf32>, vector<256x2xf32>, vector<72x2xf32> -> vector<72x2xf32>
    %c0_16 = arith.constant 0 : index
    %c0_17 = arith.constant 0 : index
    %34 = vector.load %arg7[%c0_16, %c0_17] : memref<1x2xf32, #tpu.memory_space<vmem>>, vector<1x2xf32>
    %35 = vector.broadcast %34 : vector<1x2xf32> to vector<72x2xf32>
    %36 = arith.addf %33, %35 : vector<72x2xf32>
    %c0_18 = arith.constant 0 : index
    %c0_19 = arith.constant 0 : index
    %37 = vector.load %arg8[%c0_18, %c0_19] : memref<72x2xf32, #tpu.memory_space<vmem>>, vector<72x2xf32>
    tpu.vector_store %arg8[%c0_18, %c0_19], %36 {strides = array<i32>} : memref<72x2xf32, #tpu.memory_space<vmem>>, vector<72x2xf32>,
    return
  }
  func.func @transform_0(%arg0: i32) -> (i32, i32) {
    %c0_i32 = arith.constant 0 : i32
    %c0_i32_0 = arith.constant 0 : i32
    return %arg0, %c0_i32 : i32, i32
  }
  func.func @transform_1(%arg0: i32) -> (i32, i32) {
    %c0_i32 = arith.constant 0 : i32
    %c0_i32_0 = arith.constant 0 : i32
    %c0_i32_1 = arith.constant 0 : i32
    return %c0_i32, %c0_i32_0 : i32, i32
  }
  func.func @transform_2(%arg0: i32) -> (i32, i32) {
    %c0_i32 = arith.constant 0 : i32
    %c0_i32_0 = arith.constant 0 : i32
    %c0_i32_1 = arith.constant 0 : i32
    return %c0_i32, %c0_i32_0 : i32, i32
  }
  func.func @transform_3(%arg0: i32) -> (i32, i32) {
    %c0_i32 = arith.constant 0 : i32
    %c0_i32_0 = arith.constant 0 : i32
    %c0_i32_1 = arith.constant 0 : i32
    return %c0_i32, %c0_i32_0 : i32, i32
  }
  func.func @transform_4(%arg0: i32) -> (i32, i32) {
    %c0_i32 = arith.constant 0 : i32
    %c0_i32_0 = arith.constant 0 : i32
    %c0_i32_1 = arith.constant 0 : i32
    return %c0_i32, %c0_i32_0 : i32, i32
  }
  func.func @transform_5(%arg0: i32) -> (i32, i32) {
    %c0_i32 = arith.constant 0 : i32
    %c0_i32_0 = arith.constant 0 : i32
    %c0_i32_1 = arith.constant 0 : i32
    return %c0_i32, %c0_i32_0 : i32, i32
  }
  func.func @transform_6(%arg0: i32) -> (i32, i32) {
    %c0_i32 = arith.constant 0 : i32
    %c0_i32_0 = arith.constant 0 : i32
    %c0_i32_1 = arith.constant 0 : i32
    return %c0_i32, %c0_i32_0 : i32, i32
  }
  func.func @transform_7(%arg0: i32) -> (i32, i32) {
    %c0_i32 = arith.constant 0 : i32
    %c0_i32_0 = arith.constant 0 : i32
    return %arg0, %c0_i32 : i32, i32
  }
}

</mosaic_0001>

<llo_original>
// kernel: tpu_custom_call.1
$region0: #{tpu_custom_call.1}
  #allocation0 [shape = 'u32[]', space=smem, size = 0x4, offset = 0x4, fixed_abs, tag = 'smem constant byte address 0x4 - core index']
  #allocation1 [shape = 'u32[72,128]{1,0:T(1,128)}', space=vmem, size = 0x9000, scoped, tag = 'internal scratch']
  %s0 = inlined_call_operand.vmem [shape: f32[72,56], index: 0, kind: input, shape index: {}]
  %s1 = inlined_call_operand.vmem [shape: bf16[56,512], index: 1, kind: input, shape index: {}]
  %s2 = inlined_call_operand.vmem [shape: f32[1,512], index: 2, kind: input, shape index: {}]
  %s3 = inlined_call_operand.hbm [shape: bf16[512,768], index: 3, kind: input, shape index: {}]
  %s4 = inlined_call_operand.vmem [shape: f32[1,768], index: 4, kind: input, shape index: {}]
  %s5 = inlined_call_operand.vmem [shape: f32[256,2], index: 5, kind: input, shape index: {}]
  %s6 = inlined_call_operand.vmem [shape: f32[1,2], index: 6, kind: input, shape index: {}]
  %s7 = inlined_call_operand.vmem [shape: f32[72,2], index: 7, kind: output, shape index: {}]
  %s8 = sld [smem:[#allocation0]]
  $region42: #{tpu_custom_call.1} parent=0
    _
  %s10 = ssub.s32 1, %s8
  %s11 = scalar_select 0, %s10, %s8
  $region1: #{tpu_custom_call.1} parent=0
    #allocation2 [shape = 'u8[786432]{0}', space=vmem, size = 0xc0000, scoped, tag = 'input window, operand 3, single buffered']
    #allocation3 [shape = 's32[1]{0}', space=sflag, size = 0x4, scoped, tag = 'scoped memory for tpu_custom_call.1']
    %12 = vsyncpa [#allocation3], 0
    // Predicated region
    $region2: #{tpu_custom_call.1} parent=1 // pred_check
      _
    $region3: #{tpu_custom_call.1} parent=1 // pred_check_branch
      %14 = sbr.rel (0) target = $region5
    $region4: #{tpu_custom_call.1} parent=1 // pred_region
      _
    $region5: #{tpu_custom_call.1} parent=1 // pred_fallthru
      _
    // Predicated region
    $region6: #{tpu_custom_call.1} parent=1 // pred_check
      _
    $region7: #{tpu_custom_call.1} parent=1 // pred_check_branch
      %16 = sbr.rel (0) target = $region9
    $region8: #{tpu_custom_call.1} parent=1 // pred_region
      _
    $region9: #{tpu_custom_call.1} parent=1 // pred_fallthru
      _
    // Predicated region
    $region10: #{tpu_custom_call.1} parent=1 // pred_check
      _
    $region11: #{tpu_custom_call.1} parent=1 // pred_check_branch
      %18 = sbr.rel (0) target = $region13
    $region12: #{tpu_custom_call.1} parent=1 // pred_region
      _
    $region13: #{tpu_custom_call.1} parent=1 // pred_fallthru
      _
    // Predicated region
    $region14: #{tpu_custom_call.1} parent=1 // pred_check
      _
    $region15: #{tpu_custom_call.1} parent=1 // pred_check_branch
      %20 = sbr.rel (0) target = $region17
    $region16: #{tpu_custom_call.1} parent=1 // pred_region
      %22 = vsyncadd [#allocation3], 0
      %s23 = sshll.u32 %s3, 4
      %s24 = int_to_ptr.hbm [resolvable:$true] %s23
      %s25 = sshll.u32 [#allocation2], 4
      %s26 = int_to_ptr.vmem [resolvable:$true] %s25
      %31 = dma.hbm_to_vmem [thread:$0]  %s24, 24576, %s26, [#allocation3], 384, 384, 24
    $region17: #{tpu_custom_call.1} parent=1 // pred_fallthru
      _
    // Predicated region
    $region18: #{tpu_custom_call.1} parent=1 // pred_check
      _
    $region19: #{tpu_custom_call.1} parent=1 // pred_check_branch
      %33 = sbr.rel (0) target = $region21
    $region20: #{tpu_custom_call.1} parent=1 // pred_region
      _
    $region21: #{tpu_custom_call.1} parent=1 // pred_fallthru
      _
    // Predicated region
    $region22: #{tpu_custom_call.1} parent=1 // pred_check
      _
    $region23: #{tpu_custom_call.1} parent=1 // pred_check_branch
      %35 = sbr.rel (0) target = $region25
    $region24: #{tpu_custom_call.1} parent=1 // pred_region
      _
    $region25: #{tpu_custom_call.1} parent=1 // pred_fallthru
      _
    // Predicated region
    $region26: #{tpu_custom_call.1} parent=1 // pred_check
      _
    $region27: #{tpu_custom_call.1} parent=1 // pred_check_branch
      %37 = sbr.rel (0) target = $region29
    $region28: #{tpu_custom_call.1} parent=1 // pred_region
      _
    $region29: #{tpu_custom_call.1} parent=1 // pred_fallthru
      _
    // Predicated region
    $region30: #{tpu_custom_call.1} parent=1 // pred_check
      _
    $region31: #{tpu_custom_call.1} parent=1 // pred_check_branch
      %39 = sbr.rel (0) target = $region33
    $region32: #{tpu_custom_call.1} parent=1 // pred_region
      %41 = dma.done [#allocation3], 24576
    $region33: #{tpu_custom_call.1} parent=1 // pred_fallthru
      _
    %v43 = vld [vmem:[%s0] sm:$0xff]
    %v44 = vld [vmem:[%s0 + $0x8] sm:$0xff]
    %v45 = vld [vmem:[%s0 + $0x10] sm:$0xff]
    %v46 = vld [vmem:[%s0 + $0x18] sm:$0xff]
    %v47 = vld [vmem:[%s0 + $0x20] sm:$0xff]
    %v48 = vld [vmem:[%s0 + $0x28] sm:$0xff]
    %v49 = vld [vmem:[%s0 + $0x30] sm:$0xff]
    %v50 = vld [vmem:[%s0 + $0x38] sm:$0xff]
    %v51 = vld [vmem:[%s0 + $0x40] sm:$0xff]
    %v52 = vpack.c.bf16 %v44, %v43
    %v53 = vpack.c.bf16 %v46, %v45
    %v54 = vpack.c.bf16 %v48, %v47
    %v55 = vpack.c.bf16 %v50, %v49
    %v56 = vpack.c.bf16 %v51, %v51
    %v57 = vld [vmem:[%s1] sm:$0xff]
    %v58 = vld [vmem:[%s1 + $0x8] sm:$0xff]
    %v59 = vld [vmem:[%s1 + $0x10] sm:$0xff]
    %v60 = vld [vmem:[%s1 + $0x18] sm:$0xff]
    %v61 = vld [vmem:[%s1 + $0x20] sm:$0xff]
    %v62 = vld [vmem:[%s1 + $0x28] sm:$0xff]
    %v63 = vld [vmem:[%s1 + $0x30] sm:$0xff]
    %v64 = vld [vmem:[%s1 + $0x38] sm:$0xff]
    %v65 = vld [vmem:[%s1 + $0x40] sm:$0xff]
    %v66 = vld [vmem:[%s1 + $0x48] sm:$0xff]
    %v67 = vld [vmem:[%s1 + $0x50] sm:$0xff]
    %v68 = vld [vmem:[%s1 + $0x58] sm:$0xff]
    %v69 = vld [vmem:[%s1 + $0x60] sm:$0xff]
    %v70 = vld [vmem:[%s1 + $0x68] sm:$0xff]
    %v71 = vld [vmem:[%s2] sm:$0xf]
    %v73 = vperm.slane %v71, 0
    %v74 = vperm.slane %v71, 1
    %v75 = vperm.slane %v71, 2
    %v76 = vperm.slane %v71, 3
    %v95 = vunpack.c.l.b16 %v57
    %v96 = vunpack.c.h.b16 %v57
    %v97 = vunpack.c.l.b16 %v58
    %v98 = vunpack.c.h.b16 %v58
    %v99 = vunpack.c.l.b16 %v59
    %v100 = vunpack.c.h.b16 %v59
    %v101 = vunpack.c.l.b16 %v60
    %v102 = vunpack.c.h.b16 %v60
    %v103 = vunpack.c.l.b16 %v61
    %v104 = vunpack.c.h.b16 %v61
    %v105 = vunpack.c.l.b16 %v62
    %v106 = vunpack.c.h.b16 %v62
    %v107 = vunpack.c.l.b16 %v63
    %v108 = vunpack.c.h.b16 %v63
    %v109 = vunpack.c.l.b16 %v64
    %v110 = vunpack.c.h.b16 %v64
    %v111 = vunpack.c.l.b16 %v65
    %v112 = vunpack.c.h.b16 %v65
    %v113 = vunpack.c.l.b16 %v66
    %v114 = vunpack.c.h.b16 %v66
    %v115 = vunpack.c.l.b16 %v67
    %v116 = vunpack.c.h.b16 %v67
    %v117 = vunpack.c.l.b16 %v68
    %v118 = vunpack.c.h.b16 %v68
    %v119 = vunpack.c.l.b16 %v69
    %v120 = vunpack.c.h.b16 %v69
    %v121 = vunpack.c.l.b16 %v70
    %v122 = vunpack.c.h.b16 %v70
    %v123 = vpack.c.b16 %v99, %v95
    %v124 = vpack.c.b16 %v100, %v96
    %v125 = vpack.c.b16 %v101, %v97
    %v126 = vpack.c.b16 %v102, %v98
    %v127 = vpack.c.b16 %v107, %v103
    %v128 = vpack.c.b16 %v108, %v104
    %v129 = vpack.c.b16 %v109, %v105
    %v130 = vpack.c.b16 %v110, %v106
    %v131 = vpack.c.b16 %v115, %v111
    %v132 = vpack.c.b16 %v116, %v112
    %v133 = vpack.c.b16 %v117, %v113
    %v134 = vpack.c.b16 %v118, %v114
    %v135 = vpack.c.b16 %v119, %v119
    %v136 = vpack.c.b16 %v120, %v120
    %v137 = vpack.c.b16 %v121, %v121
    %v138 = vpack.c.b16 %v122, %v122
    %vm151 = vcmask 457728
    %v153 = vsel %vm151, %v52, 0
    %v156 = vsel %vm151, %v53, 0
    %v159 = vsel %vm151, %v54, 0
    %v162 = vsel %vm151, %v55, 0
    %v165 = vsel %vm151, %v56, 0
    %vm167 = vcmask 1043456
    %v169 = vsel %vm167, %v135, 0
    %v172 = vsel %vm167, %v136, 0
    %v175 = vsel %vm167, %v137, 0
    %v178 = vsel %vm167, %v138, 0
    %180 = vmatpush.bf16.msra.mxu0 0
    %181 = vmatpush.bf16.msra.mxu0 0
    %182 = vmatpush.bf16.msra.mxu0 0
    %183 = vmatpush.bf16.msra.mxu0 0
    %184 = vmatpush.bf16.msra.mxu0 %v169
    %185 = vmatpush.bf16.msra.mxu0 %v131
    %186 = vmatpush.bf16.msra.mxu0 %v127
    %187 = vmatpush.bf16.msra.mxu0 %v123
    %188 = vmatmul.bf16.gmra.mxu0 %v153
    %v189 = vpop.f32.mrf.mxu0
    %v190 = vadd.f32 %v73, %v189
    %v191 = vpop.f32.mrf.mxu0
    %v192 = vadd.f32 %v73, %v191
    %193 = vmatmul.bf16.gmra.mxu0 %v156
    %v194 = vpop.f32.mrf.mxu0
    %v195 = vadd.f32 %v73, %v194
    %v196 = vpop.f32.mrf.mxu0
    %v197 = vadd.f32 %v73, %v196
    %198 = vmatmul.bf16.gmra.mxu0 %v159
    %v199 = vpop.f32.mrf.mxu0
    %v200 = vadd.f32 %v73, %v199
    %v201 = vpop.f32.mrf.mxu0
    %v202 = vadd.f32 %v73, %v201
    %203 = vmatmul.bf16.gmra.mxu0 %v162
    %v204 = vpop.f32.mrf.mxu0
    %v205 = vadd.f32 %v73, %v204
    %v206 = vpop.f32.mrf.mxu0
    %v207 = vadd.f32 %v73, %v206
    %208 = vmatmul.bf16.gmra.mxu0 %v165
    %v209 = vpop.f32.mrf.mxu0
    %v210 = vadd.f32 %v73, %v209
    %v211 = vpop.f32.mrf.mxu0
    %212 = vdwg.mxu0
    %213 = vmatpush.bf16.msra.mxu0 0
    %214 = vmatpush.bf16.msra.mxu0 0
    %215 = vmatpush.bf16.msra.mxu0 0
    %216 = vmatpush.bf16.msra.mxu0 0
    %217 = vmatpush.bf16.msra.mxu0 %v172
    %218 = vmatpush.bf16.msra.mxu0 %v132
    %219 = vmatpush.bf16.msra.mxu0 %v128
    %220 = vmatpush.bf16.msra.mxu0 %v124
    %221 = vmatmul.bf16.gmra.mxu0 %v153
    %v222 = vpop.f32.mrf.mxu0
    %v223 = vadd.f32 %v74, %v222
    %v224 = vpop.f32.mrf.mxu0
    %v225 = vadd.f32 %v74, %v224
    %226 = vmatmul.bf16.gmra.mxu0 %v156
    %v227 = vpop.f32.mrf.mxu0
    %v228 = vadd.f32 %v74, %v227
    %v229 = vpop.f32.mrf.mxu0
    %v230 = vadd.f32 %v74, %v229
    %231 = vmatmul.bf16.gmra.mxu0 %v159
    %v232 = vpop.f32.mrf.mxu0
    %v233 = vadd.f32 %v74, %v232
    %v234 = vpop.f32.mrf.mxu0
    %v235 = vadd.f32 %v74, %v234
    %236 = vmatmul.bf16.gmra.mxu0 %v162
    %v237 = vpop.f32.mrf.mxu0
    %v238 = vadd.f32 %v74, %v237
    %v239 = vpop.f32.mrf.mxu0
    %v240 = vadd.f32 %v74, %v239
    %241 = vmatmul.bf16.gmra.mxu0 %v165
    %v242 = vpop.f32.mrf.mxu0
    %v243 = vadd.f32 %v74, %v242
    %v244 = vpop.f32.mrf.mxu0
    %245 = vdwg.mxu0
    %246 = vmatpush.bf16.msra.mxu0 0
    %247 = vmatpush.bf16.msra.mxu0 0
    %248 = vmatpush.bf16.msra.mxu0 0
    %249 = vmatpush.bf16.msra.mxu0 0
    %250 = vmatpush.bf16.msra.mxu0 %v175
    %251 = vmatpush.bf16.msra.mxu0 %v133
    %252 = vmatpush.bf16.msra.mxu0 %v129
    %253 = vmatpush.bf16.msra.mxu0 %v125
    %254 = vmatmul.bf16.gmra.mxu0 %v153
    %v255 = vpop.f32.mrf.mxu0
    %v256 = vadd.f32 %v75, %v255
    %v257 = vpop.f32.mrf.mxu0
    %v258 = vadd.f32 %v75, %v257
    %259 = vmatmul.bf16.gmra.mxu0 %v156
    %v260 = vpop.f32.mrf.mxu0
    %v261 = vadd.f32 %v75, %v260
    %v262 = vpop.f32.mrf.mxu0
    %v263 = vadd.f32 %v75, %v262
    %264 = vmatmul.bf16.gmra.mxu0 %v159
    %v265 = vpop.f32.mrf.mxu0
    %v266 = vadd.f32 %v75, %v265
    %v267 = vpop.f32.mrf.mxu0
    %v268 = vadd.f32 %v75, %v267
    %269 = vmatmul.bf16.gmra.mxu0 %v162
    %v270 = vpop.f32.mrf.mxu0
    %v271 = vadd.f32 %v75, %v270
    %v272 = vpop.f32.mrf.mxu0
    %v273 = vadd.f32 %v75, %v272
    %274 = vmatmul.bf16.gmra.mxu0 %v165
    %v275 = vpop.f32.mrf.mxu0
    %v276 = vadd.f32 %v75, %v275
    %v277 = vpop.f32.mrf.mxu0
    %278 = vdwg.mxu0
    %279 = vmatpush.bf16.msra.mxu0 0
    %280 = vmatpush.bf16.msra.mxu0 0
    %281 = vmatpush.bf16.msra.mxu0 0
    %282 = vmatpush.bf16.msra.mxu0 0
    %283 = vmatpush.bf16.msra.mxu0 %v178
    %284 = vmatpush.bf16.msra.mxu0 %v134
    %285 = vmatpush.bf16.msra.mxu0 %v130
    %286 = vmatpush.bf16.msra.mxu0 %v126
    %287 = vmatmul.bf16.gmra.mxu0 %v153
    %v288 = vpop.f32.mrf.mxu0
    %v289 = vadd.f32 %v76, %v288
    %v290 = vpop.f32.mrf.mxu0
    %v291 = vadd.f32 %v76, %v290
    %292 = vmatmul.bf16.gmra.mxu0 %v156
    %v293 = vpop.f32.mrf.mxu0
    %v294 = vadd.f32 %v76, %v293
    %v295 = vpop.f32.mrf.mxu0
    %v296 = vadd.f32 %v76, %v295
    %297 = vmatmul.bf16.gmra.mxu0 %v159
    %v298 = vpop.f32.mrf.mxu0
    %v299 = vadd.f32 %v76, %v298
    %v300 = vpop.f32.mrf.mxu0
    %v301 = vadd.f32 %v76, %v300
    %302 = vmatmul.bf16.gmra.mxu0 %v162
    %v303 = vpop.f32.mrf.mxu0
    %v304 = vadd.f32 %v76, %v303
    %v305 = vpop.f32.mrf.mxu0
    %v306 = vadd.f32 %v76, %v305
    %307 = vmatmul.bf16.gmra.mxu0 %v165
    %v308 = vpop.f32.mrf.mxu0
    %v309 = vadd.f32 %v76, %v308
    %v310 = vpop.f32.mrf.mxu0
    %311 = vdwg.mxu0
    %v312 = vmax.f32 %v190, 0.0
    %v313 = vmax.f32 %v223, 0.0
    %v314 = vmax.f32 %v256, 0.0
    %v315 = vmax.f32 %v289, 0.0
    %v316 = vmax.f32 %v192, 0.0
    %v317 = vmax.f32 %v225, 0.0
    %v318 = vmax.f32 %v258, 0.0
    %v319 = vmax.f32 %v291, 0.0
    %v320 = vmax.f32 %v195, 0.0
    %v321 = vmax.f32 %v228, 0.0
    %v322 = vmax.f32 %v261, 0.0
    %v323 = vmax.f32 %v294, 0.0
    %v324 = vmax.f32 %v197, 0.0
    %v325 = vmax.f32 %v230, 0.0
    %v326 = vmax.f32 %v263, 0.0
    %v327 = vmax.f32 %v296, 0.0
    %v328 = vmax.f32 %v200, 0.0
    %v329 = vmax.f32 %v233, 0.0
    %v330 = vmax.f32 %v266, 0.0
    %v331 = vmax.f32 %v299, 0.0
    %v332 = vmax.f32 %v202, 0.0
    %v333 = vmax.f32 %v235, 0.0
    %v334 = vmax.f32 %v268, 0.0
    %v335 = vmax.f32 %v301, 0.0
    %v336 = vmax.f32 %v205, 0.0
    %v337 = vmax.f32 %v238, 0.0
    %v338 = vmax.f32 %v271, 0.0
    %v339 = vmax.f32 %v304, 0.0
    %v340 = vmax.f32 %v207, 0.0
    %v341 = vmax.f32 %v240, 0.0
    %v342 = vmax.f32 %v273, 0.0
    %v343 = vmax.f32 %v306, 0.0
    %v344 = vmax.f32 %v210, 0.0
    %v345 = vmax.f32 %v243, 0.0
    %v346 = vmax.f32 %v276, 0.0
    %v347 = vmax.f32 %v309, 0.0
    %v348 = vpack.c.bf16 %v316, %v312
    %v349 = vpack.c.bf16 %v317, %v313
    %v350 = vpack.c.bf16 %v318, %v314
    %v351 = vpack.c.bf16 %v319, %v315
    %v352 = vpack.c.bf16 %v324, %v320
    %v353 = vpack.c.bf16 %v325, %v321
    %v354 = vpack.c.bf16 %v326, %v322
    %v355 = vpack.c.bf16 %v327, %v323
    %v356 = vpack.c.bf16 %v332, %v328
    %v357 = vpack.c.bf16 %v333, %v329
    %v358 = vpack.c.bf16 %v334, %v330
    %v359 = vpack.c.bf16 %v335, %v331
    %v360 = vpack.c.bf16 %v340, %v336
    %v361 = vpack.c.bf16 %v341, %v337
    %v362 = vpack.c.bf16 %v342, %v338
    %v363 = vpack.c.bf16 %v343, %v339
    %v364 = vpack.c.bf16 %v344, %v344
    %v365 = vpack.c.bf16 %v345, %v345
    %v366 = vpack.c.bf16 %v346, %v346
    %v367 = vpack.c.bf16 %v347, %v347
    %v368 = vld [vmem:[#allocation2] sm:$0xff]
    %v369 = vld [vmem:[#allocation2 + $0x8] sm:$0xff]
    %v370 = vld [vmem:[#allocation2 + $0x10] sm:$0xff]
    %v371 = vld [vmem:[#allocation2 + $0x18] sm:$0xff]
    %v372 = vld [vmem:[#allocation2 + $0x20] sm:$0xff]
    %v373 = vld [vmem:[#allocation2 + $0x28] sm:$0xff]
    %v374 = vld [vmem:[#allocation2 + $0x30] sm:$0xff]
    %v375 = vld [vmem:[#allocation2 + $0x38] sm:$0xff]
    %v376 = vld [vmem:[#allocation2 + $0x40] sm:$0xff]
    %v377 = vld [vmem:[#allocation2 + $0x48] sm:$0xff]
    %v378 = vld [vmem:[#allocation2 + $0x50] sm:$0xff]
    %v379 = vld [vmem:[#allocation2 + $0x58] sm:$0xff]
    %v380 = vld [vmem:[#allocation2 + $0x60] sm:$0xff]
    %v381 = vld [vmem:[#allocation2 + $0x68] sm:$0xff]
    %v382 = vld [vmem:[#allocation2 + $0x70] sm:$0xff]
    %v383 = vld [vmem:[#allocation2 + $0x78] sm:$0xff]
    %v384 = vld [vmem:[#allocation2 + $0x80] sm:$0xff]
    %v385 = vld [vmem:[#allocation2 + $0x88] sm:$0xff]
    %v386 = vld [vmem:[#allocation2 + $0x90] sm:$0xff]
    %v387 = vld [vmem:[#allocation2 + $0x98] sm:$0xff]
    %v388 = vld [vmem:[#allocation2 + $0xa0] sm:$0xff]
    %v389 = vld [vmem:[#allocation2 + $0xa8] sm:$0xff]
    %v390 = vld [vmem:[#allocation2 + $0xb0] sm:$0xff]
    %v391 = vld [vmem:[#allocation2 + $0xb8] sm:$0xff]
    %v392 = vld [vmem:[#allocation2 + $0xc0] sm:$0xff]
    %v393 = vld [vmem:[#allocation2 + $0xc8] sm:$0xff]
    %v394 = vld [vmem:[#allocation2 + $0xd0] sm:$0xff]
    %v395 = vld [vmem:[#allocation2 + $0xd8] sm:$0xff]
    %v396 = vld [vmem:[#allocation2 + $0xe0] sm:$0xff]
    %v397 = vld [vmem:[#allocation2 + $0xe8] sm:$0xff]
    %v398 = vld [vmem:[#allocation2 + $0xf0] sm:$0xff]
    %v399 = vld [vmem:[#allocation2 + $0xf8] sm:$0xff]
    %v400 = vld [vmem:[#allocation2 + $0x100] sm:$0xff]
    %v401 = vld [vmem:[#allocation2 + $0x108] sm:$0xff]
    %v402 = vld [vmem:[#allocation2 + $0x110] sm:$0xff]
    %v403 = vld [vmem:[#allocation2 + $0x118] sm:$0xff]
    %v404 = vld [vmem:[#allocation2 + $0x120] sm:$0xff]
    %v405 = vld [vmem:[#allocation2 + $0x128] sm:$0xff]
    %v406 = vld [vmem:[#allocation2 + $0x130] sm:$0xff]
    %v407 = vld [vmem:[#allocation2 + $0x138] sm:$0xff]
    %v408 = vld [vmem:[#allocation2 + $0x140] sm:$0xff]
    %v409 = vld [vmem:[#allocation2 + $0x148] sm:$0xff]
    %v410 = vld [vmem:[#allocation2 + $0x150] sm:$0xff]
    %v411 = vld [vmem:[#allocation2 + $0x158] sm:$0xff]
    %v412 = vld [vmem:[#allocation2 + $0x160] sm:$0xff]
    %v413 = vld [vmem:[#allocation2 + $0x168] sm:$0xff]
    %v414 = vld [vmem:[#allocation2 + $0x170] sm:$0xff]
    %v415 = vld [vmem:[#allocation2 + $0x178] sm:$0xff]
    %v416 = vld [vmem:[#allocation2 + $0x180] sm:$0xff]
    %v417 = vld [vmem:[#allocation2 + $0x188] sm:$0xff]
    %v418 = vld [vmem:[#allocation2 + $0x190] sm:$0xff]
    %v419 = vld [vmem:[#allocation2 + $0x198] sm:$0xff]
    %v420 = vld [vmem:[#allocation2 + $0x1a0] sm:$0xff]
    %v421 = vld [vmem:[#allocation2 + $0x1a8] sm:$0xff]
    %v422 = vld [vmem:[#allocation2 + $0x1b0] sm:$0xff]
    %v423 = vld [vmem:[#allocation2 + $0x1b8] sm:$0xff]
    %v424 = vld [vmem:[#allocation2 + $0x1c0] sm:$0xff]
    %v425 = vld [vmem:[#allocation2 + $0x1c8] sm:$0xff]
    %v426 = vld [vmem:[#allocation2 + $0x1d0] sm:$0xff]
    %v427 = vld [vmem:[#allocation2 + $0x1d8] sm:$0xff]
    %v428 = vld [vmem:[#allocation2 + $0x1e0] sm:$0xff]
    %v429 = vld [vmem:[#allocation2 + $0x1e8] sm:$0xff]
    %v430 = vld [vmem:[#allocation2 + $0x1f0] sm:$0xff]
    %v431 = vld [vmem:[#allocation2 + $0x1f8] sm:$0xff]
    %v432 = vld [vmem:[#allocation2 + $0x200] sm:$0xff]
    %v433 = vld [vmem:[#allocation2 + $0x208] sm:$0xff]
    %v434 = vld [vmem:[#allocation2 + $0x210] sm:$0xff]
    %v435 = vld [vmem:[#allocation2 + $0x218] sm:$0xff]
    %v436 = vld [vmem:[#allocation2 + $0x220] sm:$0xff]
    %v437 = vld [vmem:[#allocation2 + $0x228] sm:$0xff]
    %v438 = vld [vmem:[#allocation2 + $0x230] sm:$0xff]
    %v439 = vld [vmem:[#allocation2 + $0x238] sm:$0xff]
    %v440 = vld [vmem:[#allocation2 + $0x240] sm:$0xff]
    %v441 = vld [vmem:[#allocation2 + $0x248] sm:$0xff]
    %v442 = vld [vmem:[#allocation2 + $0x250] sm:$0xff]
    %v443 = vld [vmem:[#allocation2 + $0x258] sm:$0xff]
    %v444 = vld [vmem:[#allocation2 + $0x260] sm:$0xff]
    %v445 = vld [vmem:[#allocation2 + $0x268] sm:$0xff]
    %v446 = vld [vmem:[#allocation2 + $0x270] sm:$0xff]
    %v447 = vld [vmem:[#allocation2 + $0x278] sm:$0xff]
    %v448 = vld [vmem:[#allocation2 + $0x280] sm:$0xff]
    %v449 = vld [vmem:[#allocation2 + $0x288] sm:$0xff]
    %v450 = vld [vmem:[#allocation2 + $0x290] sm:$0xff]
    %v451 = vld [vmem:[#allocation2 + $0x298] sm:$0xff]
    %v452 = vld [vmem:[#allocation2 + $0x2a0] sm:$0xff]
    %v453 = vld [vmem:[#allocation2 + $0x2a8] sm:$0xff]
    %v454 = vld [vmem:[#allocation2 + $0x2b0] sm:$0xff]
    %v455 = vld [vmem:[#allocation2 + $0x2b8] sm:$0xff]
    %v456 = vld [vmem:[#allocation2 + $0x2c0] sm:$0xff]
    %v457 = vld [vmem:[#allocation2 + $0x2c8] sm:$0xff]
    %v458 = vld [vmem:[#allocation2 + $0x2d0] sm:$0xff]
    %v459 = vld [vmem:[#allocation2 + $0x2d8] sm:$0xff]
    %v460 = vld [vmem:[#allocation2 + $0x2e0] sm:$0xff]
    %v461 = vld [vmem:[#allocation2 + $0x2e8] sm:$0xff]
    %v462 = vld [vmem:[#allocation2 + $0x2f0] sm:$0xff]
    %v463 = vld [vmem:[#allocation2 + $0x2f8] sm:$0xff]
    %v464 = vld [vmem:[#allocation2 + $0x300] sm:$0xff]
    %v465 = vld [vmem:[#allocation2 + $0x308] sm:$0xff]
    %v466 = vld [vmem:[#allocation2 + $0x310] sm:$0xff]
    %v467 = vld [vmem:[#allocation2 + $0x318] sm:$0xff]
    %v468 = vld [vmem:[#allocation2 + $0x320] sm:$0xff]
    %v469 = vld [vmem:[#allocation2 + $0x328] sm:$0xff]
    %v470 = vld [vmem:[#allocation2 + $0x330] sm:$0xff]
    %v471 = vld [vmem:[#allocation2 + $0x338] sm:$0xff]
    %v472 = vld [vmem:[#allocation2 + $0x340] sm:$0xff]
    %v473 = vld [vmem:[#allocation2 + $0x348] sm:$0xff]
    %v474 = vld [vmem:[#allocation2 + $0x350] sm:$0xff]
    %v475 = vld [vmem:[#allocation2 + $0x358] sm:$0xff]
    %v476 = vld [vmem:[#allocation2 + $0x360] sm:$0xff]
    %v477 = vld [vmem:[#allocation2 + $0x368] sm:$0xff]
    %v478 = vld [vmem:[#allocation2 + $0x370] sm:$0xff]
    %v479 = vld [vmem:[#allocation2 + $0x378] sm:$0xff]
    %v480 = vld [vmem:[#allocation2 + $0x380] sm:$0xff]
    %v481 = vld [vmem:[#allocation2 + $0x388] sm:$0xff]
    %v482 = vld [vmem:[#allocation2 + $0x390] sm:$0xff]
    %v483 = vld [vmem:[#allocation2 + $0x398] sm:$0xff]
    %v484 = vld [vmem:[#allocation2 + $0x3a0] sm:$0xff]
    %v485 = vld [vmem:[#allocation2 + $0x3a8] sm:$0xff]
    %v486 = vld [vmem:[#allocation2 + $0x3b0] sm:$0xff]
    %v487 = vld [vmem:[#allocation2 + $0x3b8] sm:$0xff]
    %v488 = vld [vmem:[#allocation2 + $0x3c0] sm:$0xff]
    %v489 = vld [vmem:[#allocation2 + $0x3c8] sm:$0xff]
    %v490 = vld [vmem:[#allocation2 + $0x3d0] sm:$0xff]
    %v491 = vld [vmem:[#allocation2 + $0x3d8] sm:$0xff]
    %v492 = vld [vmem:[#allocation2 + $0x3e0] sm:$0xff]
    %v493 = vld [vmem:[#allocation2 + $0x3e8] sm:$0xff]
    %v494 = vld [vmem:[#allocation2 + $0x3f0] sm:$0xff]
    %v495 = vld [vmem:[#allocation2 + $0x3f8] sm:$0xff]
    %v496 = vld [vmem:[#allocation2 + $0x400] sm:$0xff]
    %v497 = vld [vmem:[#allocation2 + $0x408] sm:$0xff]
    %v498 = vld [vmem:[#allocation2 + $0x410] sm:$0xff]
    %v499 = vld [vmem:[#allocation2 + $0x418] sm:$0xff]
    %v500 = vld [vmem:[#allocation2 + $0x420] sm:$0xff]
    %v501 = vld [vmem:[#allocation2 + $0x428] sm:$0xff]
    %v502 = vld [vmem:[#allocation2 + $0x430] sm:$0xff]
    %v503 = vld [vmem:[#allocation2 + $0x438] sm:$0xff]
    %v504 = vld [vmem:[#allocation2 + $0x440] sm:$0xff]
    %v505 = vld [vmem:[#allocation2 + $0x448] sm:$0xff]
    %v506 = vld [vmem:[#allocation2 + $0x450] sm:$0xff]
    %v507 = vld [vmem:[#allocation2 + $0x458] sm:$0xff]
    %v508 = vld [vmem:[#allocation2 + $0x460] sm:$0xff]
    %v509 = vld [vmem:[#allocation2 + $0x468] sm:$0xff]
    %v510 = vld [vmem:[#allocation2 + $0x470] sm:$0xff]
    %v511 = vld [vmem:[#allocation2 + $0x478] sm:$0xff]
    %v512 = vld [vmem:[#allocation2 + $0x480] sm:$0xff]
    %v513 = vld [vmem:[#allocation2 + $0x488] sm:$0xff]
    %v514 = vld [vmem:[#allocation2 + $0x490] sm:$0xff]
    %v515 = vld [vmem:[#allocation2 + $0x498] sm:$0xff]
    %v516 = vld [vmem:[#allocation2 + $0x4a0] sm:$0xff]
    %v517 = vld [vmem:[#allocation2 + $0x4a8] sm:$0xff]
    %v518 = vld [vmem:[#allocation2 + $0x4b0] sm:$0xff]
    %v519 = vld [vmem:[#allocation2 + $0x4b8] sm:$0xff]
    %v520 = vld [vmem:[#allocation2 + $0x4c0] sm:$0xff]
    %v521 = vld [vmem:[#allocation2 + $0x4c8] sm:$0xff]
    %v522 = vld [vmem:[#allocation2 + $0x4d0] sm:$0xff]
    %v523 = vld [vmem:[#allocation2 + $0x4d8] sm:$0xff]
    %v524 = vld [vmem:[#allocation2 + $0x4e0] sm:$0xff]
    %v525 = vld [vmem:[#allocation2 + $0x4e8] sm:$0xff]
    %v526 = vld [vmem:[#allocation2 + $0x4f0] sm:$0xff]
    %v527 = vld [vmem:[#allocation2 + $0x4f8] sm:$0xff]
    %v528 = vld [vmem:[#allocation2 + $0x500] sm:$0xff]
    %v529 = vld [vmem:[#allocation2 + $0x508] sm:$0xff]
    %v530 = vld [vmem:[#allocation2 + $0x510] sm:$0xff]
    %v531 = vld [vmem:[#allocation2 + $0x518] sm:$0xff]
    %v532 = vld [vmem:[#allocation2 + $0x520] sm:$0xff]
    %v533 = vld [vmem:[#allocation2 + $0x528] sm:$0xff]
    %v534 = vld [vmem:[#allocation2 + $0x530] sm:$0xff]
    %v535 = vld [vmem:[#allocation2 + $0x538] sm:$0xff]
    %v536 = vld [vmem:[#allocation2 + $0x540] sm:$0xff]
    %v537 = vld [vmem:[#allocation2 + $0x548] sm:$0xff]
    %v538 = vld [vmem:[#allocation2 + $0x550] sm:$0xff]
    %v539 = vld [vmem:[#allocation2 + $0x558] sm:$0xff]
    %v540 = vld [vmem:[#allocation2 + $0x560] sm:$0xff]
    %v541 = vld [vmem:[#allocation2 + $0x568] sm:$0xff]
    %v542 = vld [vmem:[#allocation2 + $0x570] sm:$0xff]
    %v543 = vld [vmem:[#allocation2 + $0x578] sm:$0xff]
    %v544 = vld [vmem:[#allocation2 + $0x580] sm:$0xff]
    %v545 = vld [vmem:[#allocation2 + $0x588] sm:$0xff]
    %v546 = vld [vmem:[#allocation2 + $0x590] sm:$0xff]
    %v547 = vld [vmem:[#allocation2 + $0x598] sm:$0xff]
    %v548 = vld [vmem:[#allocation2 + $0x5a0] sm:$0xff]
    %v549 = vld [vmem:[#allocation2 + $0x5a8] sm:$0xff]
    %v550 = vld [vmem:[#allocation2 + $0x5b0] sm:$0xff]
    %v551 = vld [vmem:[#allocation2 + $0x5b8] sm:$0xff]
    %v552 = vld [vmem:[#allocation2 + $0x5c0] sm:$0xff]
    %v553 = vld [vmem:[#allocation2 + $0x5c8] sm:$0xff]
    %v554 = vld [vmem:[#allocation2 + $0x5d0] sm:$0xff]
    %v555 = vld [vmem:[#allocation2 + $0x5d8] sm:$0xff]
    %v556 = vld [vmem:[#allocation2 + $0x5e0] sm:$0xff]
    %v557 = vld [vmem:[#allocation2 + $0x5e8] sm:$0xff]
    %v558 = vld [vmem:[#allocation2 + $0x5f0] sm:$0xff]
    %v559 = vld [vmem:[#allocation2 + $0x5f8] sm:$0xff]
    %v560 = vld [vmem:[%s4] sm:$0x3f]
    %v562 = vperm.slane %v560, 0
    %v563 = vperm.slane %v560, 1
    %v564 = vperm.slane %v560, 2
    %v565 = vperm.slane %v560, 3
    %v566 = vperm.slane %v560, 4
    %v567 = vperm.slane %v560, 5
    %v766 = vunpack.c.l.b16 %v368
    %v767 = vunpack.c.h.b16 %v368
    %v768 = vunpack.c.l.b16 %v369
    %v769 = vunpack.c.h.b16 %v369
    %v770 = vunpack.c.l.b16 %v370
    %v771 = vunpack.c.h.b16 %v370
    %v772 = vunpack.c.l.b16 %v371
    %v773 = vunpack.c.h.b16 %v371
    %v774 = vunpack.c.l.b16 %v372
    %v775 = vunpack.c.h.b16 %v372
    %v776 = vunpack.c.l.b16 %v373
    %v777 = vunpack.c.h.b16 %v373
    %v778 = vunpack.c.l.b16 %v374
    %v779 = vunpack.c.h.b16 %v374
    %v780 = vunpack.c.l.b16 %v375
    %v781 = vunpack.c.h.b16 %v375
    %v782 = vunpack.c.l.b16 %v376
    %v783 = vunpack.c.h.b16 %v376
    %v784 = vunpack.c.l.b16 %v377
    %v785 = vunpack.c.h.b16 %v377
    %v786 = vunpack.c.l.b16 %v378
    %v787 = vunpack.c.h.b16 %v378
    %v788 = vunpack.c.l.b16 %v379
    %v789 = vunpack.c.h.b16 %v379
    %v790 = vunpack.c.l.b16 %v380
    %v791 = vunpack.c.h.b16 %v380
    %v792 = vunpack.c.l.b16 %v381
    %v793 = vunpack.c.h.b16 %v381
    %v794 = vunpack.c.l.b16 %v382
    %v795 = vunpack.c.h.b16 %v382
    %v796 = vunpack.c.l.b16 %v383
    %v797 = vunpack.c.h.b16 %v383
    %v798 = vunpack.c.l.b16 %v384
    %v799 = vunpack.c.h.b16 %v384
    %v800 = vunpack.c.l.b16 %v385
    %v801 = vunpack.c.h.b16 %v385
    %v802 = vunpack.c.l.b16 %v386
    %v803 = vunpack.c.h.b16 %v386
    %v804 = vunpack.c.l.b16 %v387
    %v805 = vunpack.c.h.b16 %v387
    %v806 = vunpack.c.l.b16 %v388
    %v807 = vunpack.c.h.b16 %v388
    %v808 = vunpack.c.l.b16 %v389
    %v809 = vunpack.c.h.b16 %v389
    %v810 = vunpack.c.l.b16 %v390
    %v811 = vunpack.c.h.b16 %v390
    %v812 = vunpack.c.l.b16 %v391
    %v813 = vunpack.c.h.b16 %v391
    %v814 = vunpack.c.l.b16 %v392
    %v815 = vunpack.c.h.b16 %v392
    %v816 = vunpack.c.l.b16 %v393
    %v817 = vunpack.c.h.b16 %v393
    %v818 = vunpack.c.l.b16 %v394
    %v819 = vunpack.c.h.b16 %v394
    %v820 = vunpack.c.l.b16 %v395
    %v821 = vunpack.c.h.b16 %v395
    %v822 = vunpack.c.l.b16 %v396
    %v823 = vunpack.c.h.b16 %v396
    %v824 = vunpack.c.l.b16 %v397
    %v825 = vunpack.c.h.b16 %v397
    %v826 = vunpack.c.l.b16 %v398
    %v827 = vunpack.c.h.b16 %v398
    %v828 = vunpack.c.l.b16 %v399
    %v829 = vunpack.c.h.b16 %v399
    %v830 = vunpack.c.l.b16 %v400
    %v831 = vunpack.c.h.b16 %v400
    %v832 = vunpack.c.l.b16 %v401
    %v833 = vunpack.c.h.b16 %v401
    %v834 = vunpack.c.l.b16 %v402
    %v835 = vunpack.c.h.b16 %v402
    %v836 = vunpack.c.l.b16 %v403
    %v837 = vunpack.c.h.b16 %v403
    %v838 = vunpack.c.l.b16 %v404
    %v839 = vunpack.c.h.b16 %v404
    %v840 = vunpack.c.l.b16 %v405
    %v841 = vunpack.c.h.b16 %v405
    %v842 = vunpack.c.l.b16 %v406
    %v843 = vunpack.c.h.b16 %v406
    %v844 = vunpack.c.l.b16 %v407
    %v845 = vunpack.c.h.b16 %v407
    %v846 = vunpack.c.l.b16 %v408
    %v847 = vunpack.c.h.b16 %v408
    %v848 = vunpack.c.l.b16 %v409
    %v849 = vunpack.c.h.b16 %v409
    %v850 = vunpack.c.l.b16 %v410
    %v851 = vunpack.c.h.b16 %v410
    %v852 = vunpack.c.l.b16 %v411
    %v853 = vunpack.c.h.b16 %v411
    %v854 = vunpack.c.l.b16 %v412
    %v855 = vunpack.c.h.b16 %v412
    %v856 = vunpack.c.l.b16 %v413
    %v857 = vunpack.c.h.b16 %v413
    %v858 = vunpack.c.l.b16 %v414
    %v859 = vunpack.c.h.b16 %v414
    %v860 = vunpack.c.l.b16 %v415
    %v861 = vunpack.c.h.b16 %v415
    %v862 = vunpack.c.l.b16 %v416
    %v863 = vunpack.c.h.b16 %v416
    %v864 = vunpack.c.l.b16 %v417
    %v865 = vunpack.c.h.b16 %v417
    %v866 = vunpack.c.l.b16 %v418
    %v867 = vunpack.c.h.b16 %v418
    %v868 = vunpack.c.l.b16 %v419
    %v869 = vunpack.c.h.b16 %v419
    %v870 = vunpack.c.l.b16 %v420
    %v871 = vunpack.c.h.b16 %v420
    %v872 = vunpack.c.l.b16 %v421
    %v873 = vunpack.c.h.b16 %v421
    %v874 = vunpack.c.l.b16 %v422
    %v875 = vunpack.c.h.b16 %v422
    %v876 = vunpack.c.l.b16 %v423
    %v877 = vunpack.c.h.b16 %v423
    %v878 = vunpack.c.l.b16 %v424
    %v879 = vunpack.c.h.b16 %v424
    %v880 = vunpack.c.l.b16 %v425
    %v881 = vunpack.c.h.b16 %v425
    %v882 = vunpack.c.l.b16 %v426
    %v883 = vunpack.c.h.b16 %v426
    %v884 = vunpack.c.l.b16 %v427
    %v885 = vunpack.c.h.b16 %v427
    %v886 = vunpack.c.l.b16 %v428
    %v887 = vunpack.c.h.b16 %v428
    %v888 = vunpack.c.l.b16 %v429
    %v889 = vunpack.c.h.b16 %v429
    %v890 = vunpack.c.l.b16 %v430
    %v891 = vunpack.c.h.b16 %v430
    %v892 = vunpack.c.l.b16 %v431
    %v893 = vunpack.c.h.b16 %v431
    %v894 = vunpack.c.l.b16 %v432
    %v895 = vunpack.c.h.b16 %v432
    %v896 = vunpack.c.l.b16 %v433
    %v897 = vunpack.c.h.b16 %v433
    %v898 = vunpack.c.l.b16 %v434
    %v899 = vunpack.c.h.b16 %v434
    %v900 = vunpack.c.l.b16 %v435
    %v901 = vunpack.c.h.b16 %v435
    %v902 = vunpack.c.l.b16 %v436
    %v903 = vunpack.c.h.b16 %v436
    %v904 = vunpack.c.l.b16 %v437
    %v905 = vunpack.c.h.b16 %v437
    %v906 = vunpack.c.l.b16 %v438
    %v907 = vunpack.c.h.b16 %v438
    %v908 = vunpack.c.l.b16 %v439
    %v909 = vunpack.c.h.b16 %v439
    %v910 = vunpack.c.l.b16 %v440
    %v911 = vunpack.c.h.b16 %v440
    %v912 = vunpack.c.l.b16 %v441
    %v913 = vunpack.c.h.b16 %v441
    %v914 = vunpack.c.l.b16 %v442
    %v915 = vunpack.c.h.b16 %v442
    %v916 = vunpack.c.l.b16 %v443
    %v917 = vunpack.c.h.b16 %v443
    %v918 = vunpack.c.l.b16 %v444
    %v919 = vunpack.c.h.b16 %v444
    %v920 = vunpack.c.l.b16 %v445
    %v921 = vunpack.c.h.b16 %v445
    %v922 = vunpack.c.l.b16 %v446
    %v923 = vunpack.c.h.b16 %v446
    %v924 = vunpack.c.l.b16 %v447
    %v925 = vunpack.c.h.b16 %v447
    %v926 = vunpack.c.l.b16 %v448
    %v927 = vunpack.c.h.b16 %v448
    %v928 = vunpack.c.l.b16 %v449
    %v929 = vunpack.c.h.b16 %v449
    %v930 = vunpack.c.l.b16 %v450
    %v931 = vunpack.c.h.b16 %v450
    %v932 = vunpack.c.l.b16 %v451
    %v933 = vunpack.c.h.b16 %v451
    %v934 = vunpack.c.l.b16 %v452
    %v935 = vunpack.c.h.b16 %v452
    %v936 = vunpack.c.l.b16 %v453
    %v937 = vunpack.c.h.b16 %v453
    %v938 = vunpack.c.l.b16 %v454
    %v939 = vunpack.c.h.b16 %v454
    %v940 = vunpack.c.l.b16 %v455
    %v941 = vunpack.c.h.b16 %v455
    %v942 = vunpack.c.l.b16 %v456
    %v943 = vunpack.c.h.b16 %v456
    %v944 = vunpack.c.l.b16 %v457
    %v945 = vunpack.c.h.b16 %v457
    %v946 = vunpack.c.l.b16 %v458
    %v947 = vunpack.c.h.b16 %v458
    %v948 = vunpack.c.l.b16 %v459
    %v949 = vunpack.c.h.b16 %v459
    %v950 = vunpack.c.l.b16 %v460
    %v951 = vunpack.c.h.b16 %v460
    %v952 = vunpack.c.l.b16 %v461
    %v953 = vunpack.c.h.b16 %v461
    %v954 = vunpack.c.l.b16 %v462
    %v955 = vunpack.c.h.b16 %v462
    %v956 = vunpack.c.l.b16 %v463
    %v957 = vunpack.c.h.b16 %v463
    %v958 = vunpack.c.l.b16 %v464
    %v959 = vunpack.c.h.b16 %v464
    %v960 = vunpack.c.l.b16 %v465
    %v961 = vunpack.c.h.b16 %v465
    %v962 = vunpack.c.l.b16 %v466
    %v963 = vunpack.c.h.b16 %v466
    %v964 = vunpack.c.l.b16 %v467
    %v965 = vunpack.c.h.b16 %v467
    %v966 = vunpack.c.l.b16 %v468
    %v967 = vunpack.c.h.b16 %v468
    %v968 = vunpack.c.l.b16 %v469
    %v969 = vunpack.c.h.b16 %v469
    %v970 = vunpack.c.l.b16 %v470
    %v971 = vunpack.c.h.b16 %v470
    %v972 = vunpack.c.l.b16 %v471
    %v973 = vunpack.c.h.b16 %v471
    %v974 = vunpack.c.l.b16 %v472
    %v975 = vunpack.c.h.b16 %v472
    %v976 = vunpack.c.l.b16 %v473
    %v977 = vunpack.c.h.b16 %v473
    %v978 = vunpack.c.l.b16 %v474
    %v979 = vunpack.c.h.b16 %v474
    %v980 = vunpack.c.l.b16 %v475
    %v981 = vunpack.c.h.b16 %v475
    %v982 = vunpack.c.l.b16 %v476
    %v983 = vunpack.c.h.b16 %v476
    %v984 = vunpack.c.l.b16 %v477
    %v985 = vunpack.c.h.b16 %v477
    %v986 = vunpack.c.l.b16 %v478
    %v987 = vunpack.c.h.b16 %v478
    %v988 = vunpack.c.l.b16 %v479
    %v989 = vunpack.c.h.b16 %v479
    %v990 = vunpack.c.l.b16 %v480
    %v991 = vunpack.c.h.b16 %v480
    %v992 = vunpack.c.l.b16 %v481
    %v993 = vunpack.c.h.b16 %v481
    %v994 = vunpack.c.l.b16 %v482
    %v995 = vunpack.c.h.b16 %v482
    %v996 = vunpack.c.l.b16 %v483
    %v997 = vunpack.c.h.b16 %v483
    %v998 = vunpack.c.l.b16 %v484
    %v999 = vunpack.c.h.b16 %v484
    %v1000 = vunpack.c.l.b16 %v485
    %v1001 = vunpack.c.h.b16 %v485
    %v1002 = vunpack.c.l.b16 %v486
    %v1003 = vunpack.c.h.b16 %v486
    %v1004 = vunpack.c.l.b16 %v487
    %v1005 = vunpack.c.h.b16 %v487
    %v1006 = vunpack.c.l.b16 %v488
    %v1007 = vunpack.c.h.b16 %v488
    %v1008 = vunpack.c.l.b16 %v489
    %v1009 = vunpack.c.h.b16 %v489
    %v1010 = vunpack.c.l.b16 %v490
    %v1011 = vunpack.c.h.b16 %v490
    %v1012 = vunpack.c.l.b16 %v491
    %v1013 = vunpack.c.h.b16 %v491
    %v1014 = vunpack.c.l.b16 %v492
    %v1015 = vunpack.c.h.b16 %v492
    %v1016 = vunpack.c.l.b16 %v493
    %v1017 = vunpack.c.h.b16 %v493
    %v1018 = vunpack.c.l.b16 %v494
    %v1019 = vunpack.c.h.b16 %v494
    %v1020 = vunpack.c.l.b16 %v495
    %v1021 = vunpack.c.h.b16 %v495
    %v1022 = vunpack.c.l.b16 %v496
    %v1023 = vunpack.c.h.b16 %v496
    %v1024 = vunpack.c.l.b16 %v497
    %v1025 = vunpack.c.h.b16 %v497
    %v1026 = vunpack.c.l.b16 %v498
    %v1027 = vunpack.c.h.b16 %v498
    %v1028 = vunpack.c.l.b16 %v499
    %v1029 = vunpack.c.h.b16 %v499
    %v1030 = vunpack.c.l.b16 %v500
    %v1031 = vunpack.c.h.b16 %v500
    %v1032 = vunpack.c.l.b16 %v501
    %v1033 = vunpack.c.h.b16 %v501
    %v1034 = vunpack.c.l.b16 %v502
    %v1035 = vunpack.c.h.b16 %v502
    %v1036 = vunpack.c.l.b16 %v503
    %v1037 = vunpack.c.h.b16 %v503
    %v1038 = vunpack.c.l.b16 %v504
    %v1039 = vunpack.c.h.b16 %v504
    %v1040 = vunpack.c.l.b16 %v505
    %v1041 = vunpack.c.h.b16 %v505
    %v1042 = vunpack.c.l.b16 %v506
    %v1043 = vunpack.c.h.b16 %v506
    %v1044 = vunpack.c.l.b16 %v507
    %v1045 = vunpack.c.h.b16 %v507
    %v1046 = vunpack.c.l.b16 %v508
    %v1047 = vunpack.c.h.b16 %v508
    %v1048 = vunpack.c.l.b16 %v509
    %v1049 = vunpack.c.h.b16 %v509
    %v1050 = vunpack.c.l.b16 %v510
    %v1051 = vunpack.c.h.b16 %v510
    %v1052 = vunpack.c.l.b16 %v511
    %v1053 = vunpack.c.h.b16 %v511
    %v1054 = vunpack.c.l.b16 %v512
    %v1055 = vunpack.c.h.b16 %v512
    %v1056 = vunpack.c.l.b16 %v513
    %v1057 = vunpack.c.h.b16 %v513
    %v1058 = vunpack.c.l.b16 %v514
    %v1059 = vunpack.c.h.b16 %v514
    %v1060 = vunpack.c.l.b16 %v515
    %v1061 = vunpack.c.h.b16 %v515
    %v1062 = vunpack.c.l.b16 %v516
    %v1063 = vunpack.c.h.b16 %v516
    %v1064 = vunpack.c.l.b16 %v517
    %v1065 = vunpack.c.h.b16 %v517
    %v1066 = vunpack.c.l.b16 %v518
    %v1067 = vunpack.c.h.b16 %v518
    %v1068 = vunpack.c.l.b16 %v519
    %v1069 = vunpack.c.h.b16 %v519
    %v1070 = vunpack.c.l.b16 %v520
    %v1071 = vunpack.c.h.b16 %v520
    %v1072 = vunpack.c.l.b16 %v521
    %v1073 = vunpack.c.h.b16 %v521
    %v1074 = vunpack.c.l.b16 %v522
    %v1075 = vunpack.c.h.b16 %v522
    %v1076 = vunpack.c.l.b16 %v523
    %v1077 = vunpack.c.h.b16 %v523
    %v1078 = vunpack.c.l.b16 %v524
    %v1079 = vunpack.c.h.b16 %v524
    %v1080 = vunpack.c.l.b16 %v525
    %v1081 = vunpack.c.h.b16 %v525
    %v1082 = vunpack.c.l.b16 %v526
    %v1083 = vunpack.c.h.b16 %v526
    %v1084 = vunpack.c.l.b16 %v527
    %v1085 = vunpack.c.h.b16 %v527
    %v1086 = vunpack.c.l.b16 %v528
    %v1087 = vunpack.c.h.b16 %v528
    %v1088 = vunpack.c.l.b16 %v529
    %v1089 = vunpack.c.h.b16 %v529
    %v1090 = vunpack.c.l.b16 %v530
    %v1091 = vunpack.c.h.b16 %v530
    %v1092 = vunpack.c.l.b16 %v531
    %v1093 = vunpack.c.h.b16 %v531
    %v1094 = vunpack.c.l.b16 %v532
    %v1095 = vunpack.c.h.b16 %v532
    %v1096 = vunpack.c.l.b16 %v533
    %v1097 = vunpack.c.h.b16 %v533
    %v1098 = vunpack.c.l.b16 %v534
    %v1099 = vunpack.c.h.b16 %v534
    %v1100 = vunpack.c.l.b16 %v535
    %v1101 = vunpack.c.h.b16 %v535
    %v1102 = vunpack.c.l.b16 %v536
    %v1103 = vunpack.c.h.b16 %v536
    %v1104 = vunpack.c.l.b16 %v537
    %v1105 = vunpack.c.h.b16 %v537
    %v1106 = vunpack.c.l.b16 %v538
    %v1107 = vunpack.c.h.b16 %v538
    %v1108 = vunpack.c.l.b16 %v539
    %v1109 = vunpack.c.h.b16 %v539
    %v1110 = vunpack.c.l.b16 %v540
    %v1111 = vunpack.c.h.b16 %v540
    %v1112 = vunpack.c.l.b16 %v541
    %v1113 = vunpack.c.h.b16 %v541
    %v1114 = vunpack.c.l.b16 %v542
    %v1115 = vunpack.c.h.b16 %v542
    %v1116 = vunpack.c.l.b16 %v543
    %v1117 = vunpack.c.h.b16 %v543
    %v1118 = vunpack.c.l.b16 %v544
    %v1119 = vunpack.c.h.b16 %v544
    %v1120 = vunpack.c.l.b16 %v545
    %v1121 = vunpack.c.h.b16 %v545
    %v1122 = vunpack.c.l.b16 %v546
    %v1123 = vunpack.c.h.b16 %v546
    %v1124 = vunpack.c.l.b16 %v547
    %v1125 = vunpack.c.h.b16 %v547
    %v1126 = vunpack.c.l.b16 %v548
    %v1127 = vunpack.c.h.b16 %v548
    %v1128 = vunpack.c.l.b16 %v549
    %v1129 = vunpack.c.h.b16 %v549
    %v1130 = vunpack.c.l.b16 %v550
    %v1131 = vunpack.c.h.b16 %v550
    %v1132 = vunpack.c.l.b16 %v551
    %v1133 = vunpack.c.h.b16 %v551
    %v1134 = vunpack.c.l.b16 %v552
    %v1135 = vunpack.c.h.b16 %v552
    %v1136 = vunpack.c.l.b16 %v553
    %v1137 = vunpack.c.h.b16 %v553
    %v1138 = vunpack.c.l.b16 %v554
    %v1139 = vunpack.c.h.b16 %v554
    %v1140 = vunpack.c.l.b16 %v555
    %v1141 = vunpack.c.h.b16 %v555
    %v1142 = vunpack.c.l.b16 %v556
    %v1143 = vunpack.c.h.b16 %v556
    %v1144 = vunpack.c.l.b16 %v557
    %v1145 = vunpack.c.h.b16 %v557
    %v1146 = vunpack.c.l.b16 %v558
    %v1147 = vunpack.c.h.b16 %v558
    %v1148 = vunpack.c.l.b16 %v559
    %v1149 = vunpack.c.h.b16 %v559
    %v1150 = vpack.c.b16 %v772, %v766
    %v1151 = vpack.c.b16 %v773, %v767
    %v1152 = vpack.c.b16 %v774, %v768
    %v1153 = vpack.c.b16 %v775, %v769
    %v1154 = vpack.c.b16 %v776, %v770
    %v1155 = vpack.c.b16 %v777, %v771
    %v1156 = vpack.c.b16 %v784, %v778
    %v1157 = vpack.c.b16 %v785, %v779
    %v1158 = vpack.c.b16 %v786, %v780
    %v1159 = vpack.c.b16 %v787, %v781
    %v1160 = vpack.c.b16 %v788, %v782
    %v1161 = vpack.c.b16 %v789, %v783
    %v1162 = vpack.c.b16 %v796, %v790
    %v1163 = vpack.c.b16 %v797, %v791
    %v1164 = vpack.c.b16 %v798, %v792
    %v1165 = vpack.c.b16 %v799, %v793
    %v1166 = vpack.c.b16 %v800, %v794
    %v1167 = vpack.c.b16 %v801, %v795
    %v1168 = vpack.c.b16 %v808, %v802
    %v1169 = vpack.c.b16 %v809, %v803
    %v1170 = vpack.c.b16 %v810, %v804
    %v1171 = vpack.c.b16 %v811, %v805
    %v1172 = vpack.c.b16 %v812, %v806
    %v1173 = vpack.c.b16 %v813, %v807
    %v1174 = vpack.c.b16 %v820, %v814
    %v1175 = vpack.c.b16 %v821, %v815
    %v1176 = vpack.c.b16 %v822, %v816
    %v1177 = vpack.c.b16 %v823, %v817
    %v1178 = vpack.c.b16 %v824, %v818
    %v1179 = vpack.c.b16 %v825, %v819
    %v1180 = vpack.c.b16 %v832, %v826
    %v1181 = vpack.c.b16 %v833, %v827
    %v1182 = vpack.c.b16 %v834, %v828
    %v1183 = vpack.c.b16 %v835, %v829
    %v1184 = vpack.c.b16 %v836, %v830
    %v1185 = vpack.c.b16 %v837, %v831
    %v1186 = vpack.c.b16 %v844, %v838
    %v1187 = vpack.c.b16 %v845, %v839
    %v1188 = vpack.c.b16 %v846, %v840
    %v1189 = vpack.c.b16 %v847, %v841
    %v1190 = vpack.c.b16 %v848, %v842
    %v1191 = vpack.c.b16 %v849, %v843
    %v1192 = vpack.c.b16 %v856, %v850
    %v1193 = vpack.c.b16 %v857, %v851
    %v1194 = vpack.c.b16 %v858, %v852
    %v1195 = vpack.c.b16 %v859, %v853
    %v1196 = vpack.c.b16 %v860, %v854
    %v1197 = vpack.c.b16 %v861, %v855
    %v1198 = vpack.c.b16 %v868, %v862
    %v1199 = vpack.c.b16 %v869, %v863
    %v1200 = vpack.c.b16 %v870, %v864
    %v1201 = vpack.c.b16 %v871, %v865
    %v1202 = vpack.c.b16 %v872, %v866
    %v1203 = vpack.c.b16 %v873, %v867
    %v1204 = vpack.c.b16 %v880, %v874
    %v1205 = vpack.c.b16 %v881, %v875
    %v1206 = vpack.c.b16 %v882, %v876
    %v1207 = vpack.c.b16 %v883, %v877
    %v1208 = vpack.c.b16 %v884, %v878
    %v1209 = vpack.c.b16 %v885, %v879
    %v1210 = vpack.c.b16 %v892, %v886
    %v1211 = vpack.c.b16 %v893, %v887
    %v1212 = vpack.c.b16 %v894, %v888
    %v1213 = vpack.c.b16 %v895, %v889
    %v1214 = vpack.c.b16 %v896, %v890
    %v1215 = vpack.c.b16 %v897, %v891
    %v1216 = vpack.c.b16 %v904, %v898
    %v1217 = vpack.c.b16 %v905, %v899
    %v1218 = vpack.c.b16 %v906, %v900
    %v1219 = vpack.c.b16 %v907, %v901
    %v1220 = vpack.c.b16 %v908, %v902
    %v1221 = vpack.c.b16 %v909, %v903
    %v1222 = vpack.c.b16 %v916, %v910
    %v1223 = vpack.c.b16 %v917, %v911
    %v1224 = vpack.c.b16 %v918, %v912
    %v1225 = vpack.c.b16 %v919, %v913
    %v1226 = vpack.c.b16 %v920, %v914
    %v1227 = vpack.c.b16 %v921, %v915
    %v1228 = vpack.c.b16 %v928, %v922
    %v1229 = vpack.c.b16 %v929, %v923
    %v1230 = vpack.c.b16 %v930, %v924
    %v1231 = vpack.c.b16 %v931, %v925
    %v1232 = vpack.c.b16 %v932, %v926
    %v1233 = vpack.c.b16 %v933, %v927
    %v1234 = vpack.c.b16 %v940, %v934
    %v1235 = vpack.c.b16 %v941, %v935
    %v1236 = vpack.c.b16 %v942, %v936
    %v1237 = vpack.c.b16 %v943, %v937
    %v1238 = vpack.c.b16 %v944, %v938
    %v1239 = vpack.c.b16 %v945, %v939
    %v1240 = vpack.c.b16 %v952, %v946
    %v1241 = vpack.c.b16 %v953, %v947
    %v1242 = vpack.c.b16 %v954, %v948
    %v1243 = vpack.c.b16 %v955, %v949
    %v1244 = vpack.c.b16 %v956, %v950
    %v1245 = vpack.c.b16 %v957, %v951
    %v1246 = vpack.c.b16 %v964, %v958
    %v1247 = vpack.c.b16 %v965, %v959
    %v1248 = vpack.c.b16 %v966, %v960
    %v1249 = vpack.c.b16 %v967, %v961
    %v1250 = vpack.c.b16 %v968, %v962
    %v1251 = vpack.c.b16 %v969, %v963
    %v1252 = vpack.c.b16 %v976, %v970
    %v1253 = vpack.c.b16 %v977, %v971
    %v1254 = vpack.c.b16 %v978, %v972
    %v1255 = vpack.c.b16 %v979, %v973
    %v1256 = vpack.c.b16 %v980, %v974
    %v1257 = vpack.c.b16 %v981, %v975
    %v1258 = vpack.c.b16 %v988, %v982
    %v1259 = vpack.c.b16 %v989, %v983
    %v1260 = vpack.c.b16 %v990, %v984
    %v1261 = vpack.c.b16 %v991, %v985
    %v1262 = vpack.c.b16 %v992, %v986
    %v1263 = vpack.c.b16 %v993, %v987
    %v1264 = vpack.c.b16 %v1000, %v994
    %v1265 = vpack.c.b16 %v1001, %v995
    %v1266 = vpack.c.b16 %v1002, %v996
    %v1267 = vpack.c.b16 %v1003, %v997
    %v1268 = vpack.c.b16 %v1004, %v998
    %v1269 = vpack.c.b16 %v1005, %v999
    %v1270 = vpack.c.b16 %v1012, %v1006
    %v1271 = vpack.c.b16 %v1013, %v1007
    %v1272 = vpack.c.b16 %v1014, %v1008
    %v1273 = vpack.c.b16 %v1015, %v1009
    %v1274 = vpack.c.b16 %v1016, %v1010
    %v1275 = vpack.c.b16 %v1017, %v1011
    %v1276 = vpack.c.b16 %v1024, %v1018
    %v1277 = vpack.c.b16 %v1025, %v1019
    %v1278 = vpack.c.b16 %v1026, %v1020
    %v1279 = vpack.c.b16 %v1027, %v1021
    %v1280 = vpack.c.b16 %v1028, %v1022
    %v1281 = vpack.c.b16 %v1029, %v1023
    %v1282 = vpack.c.b16 %v1036, %v1030
    %v1283 = vpack.c.b16 %v1037, %v1031
    %v1284 = vpack.c.b16 %v1038, %v1032
    %v1285 = vpack.c.b16 %v1039, %v1033
    %v1286 = vpack.c.b16 %v1040, %v1034
    %v1287 = vpack.c.b16 %v1041, %v1035
    %v1288 = vpack.c.b16 %v1048, %v1042
    %v1289 = vpack.c.b16 %v1049, %v1043
    %v1290 = vpack.c.b16 %v1050, %v1044
    %v1291 = vpack.c.b16 %v1051, %v1045
    %v1292 = vpack.c.b16 %v1052, %v1046
    %v1293 = vpack.c.b16 %v1053, %v1047
    %v1294 = vpack.c.b16 %v1060, %v1054
    %v1295 = vpack.c.b16 %v1061, %v1055
    %v1296 = vpack.c.b16 %v1062, %v1056
    %v1297 = vpack.c.b16 %v1063, %v1057
    %v1298 = vpack.c.b16 %v1064, %v1058
    %v1299 = vpack.c.b16 %v1065, %v1059
    %v1300 = vpack.c.b16 %v1072, %v1066
    %v1301 = vpack.c.b16 %v1073, %v1067
    %v1302 = vpack.c.b16 %v1074, %v1068
    %v1303 = vpack.c.b16 %v1075, %v1069
    %v1304 = vpack.c.b16 %v1076, %v1070
    %v1305 = vpack.c.b16 %v1077, %v1071
    %v1306 = vpack.c.b16 %v1084, %v1078
    %v1307 = vpack.c.b16 %v1085, %v1079
    %v1308 = vpack.c.b16 %v1086, %v1080
    %v1309 = vpack.c.b16 %v1087, %v1081
    %v1310 = vpack.c.b16 %v1088, %v1082
    %v1311 = vpack.c.b16 %v1089, %v1083
    %v1312 = vpack.c.b16 %v1096, %v1090
    %v1313 = vpack.c.b16 %v1097, %v1091
    %v1314 = vpack.c.b16 %v1098, %v1092
    %v1315 = vpack.c.b16 %v1099, %v1093
    %v1316 = vpack.c.b16 %v1100, %v1094
    %v1317 = vpack.c.b16 %v1101, %v1095
    %v1318 = vpack.c.b16 %v1108, %v1102
    %v1319 = vpack.c.b16 %v1109, %v1103
    %v1320 = vpack.c.b16 %v1110, %v1104
    %v1321 = vpack.c.b16 %v1111, %v1105
    %v1322 = vpack.c.b16 %v1112, %v1106
    %v1323 = vpack.c.b16 %v1113, %v1107
    %v1324 = vpack.c.b16 %v1120, %v1114
    %v1325 = vpack.c.b16 %v1121, %v1115
    %v1326 = vpack.c.b16 %v1122, %v1116
    %v1327 = vpack.c.b16 %v1123, %v1117
    %v1328 = vpack.c.b16 %v1124, %v1118
    %v1329 = vpack.c.b16 %v1125, %v1119
    %v1330 = vpack.c.b16 %v1132, %v1126
    %v1331 = vpack.c.b16 %v1133, %v1127
    %v1332 = vpack.c.b16 %v1134, %v1128
    %v1333 = vpack.c.b16 %v1135, %v1129
    %v1334 = vpack.c.b16 %v1136, %v1130
    %v1335 = vpack.c.b16 %v1137, %v1131
    %v1336 = vpack.c.b16 %v1144, %v1138
    %v1337 = vpack.c.b16 %v1145, %v1139
    %v1338 = vpack.c.b16 %v1146, %v1140
    %v1339 = vpack.c.b16 %v1147, %v1141
    %v1340 = vpack.c.b16 %v1148, %v1142
    %v1341 = vpack.c.b16 %v1149, %v1143
    %1534 = vmatpush.bf16.msra.mxu0 %v1192
    %1535 = vmatpush.bf16.msra.mxu0 %v1186
    %1536 = vmatpush.bf16.msra.mxu0 %v1180
    %1537 = vmatpush.bf16.msra.mxu0 %v1174
    %1538 = vmatpush.bf16.msra.mxu0 %v1168
    %1539 = vmatpush.bf16.msra.mxu0 %v1162
    %1540 = vmatpush.bf16.msra.mxu0 %v1156
    %1541 = vmatpush.bf16.msra.mxu0 %v1150
    %1542 = vmatmul.bf16.gmra.mxu0 %v348
    %v1543 = vpop.f32.mrf.mxu0
    %v1544 = vadd.f32 %v562, %v1543
    %v1545 = vpop.f32.mrf.mxu0
    %v1546 = vadd.f32 %v562, %v1545
    %1547 = vmatmul.bf16.gmra.mxu0 %v352
    %v1548 = vpop.f32.mrf.mxu0
    %v1549 = vadd.f32 %v562, %v1548
    %v1550 = vpop.f32.mrf.mxu0
    %v1551 = vadd.f32 %v562, %v1550
    %1552 = vmatmul.bf16.gmra.mxu0 %v356
    %v1553 = vpop.f32.mrf.mxu0
    %v1554 = vadd.f32 %v562, %v1553
    %v1555 = vpop.f32.mrf.mxu0
    %v1556 = vadd.f32 %v562, %v1555
    %1557 = vmatmul.bf16.gmra.mxu0 %v360
    %v1558 = vpop.f32.mrf.mxu0
    %v1559 = vadd.f32 %v562, %v1558
    %v1560 = vpop.f32.mrf.mxu0
    %v1561 = vadd.f32 %v562, %v1560
    %1562 = vmatmul.bf16.gmra.mxu0 %v364
    %v1563 = vpop.f32.mrf.mxu0
    %v1564 = vadd.f32 %v562, %v1563
    %v1565 = vpop.f32.mrf.mxu0
    %1566 = vdwg.mxu0
    %1567 = vmatpush.bf16.msra.mxu0 %v1240
    %1568 = vmatpush.bf16.msra.mxu0 %v1234
    %1569 = vmatpush.bf16.msra.mxu0 %v1228
    %1570 = vmatpush.bf16.msra.mxu0 %v1222
    %1571 = vmatpush.bf16.msra.mxu0 %v1216
    %1572 = vmatpush.bf16.msra.mxu0 %v1210
    %1573 = vmatpush.bf16.msra.mxu0 %v1204
    %1574 = vmatpush.bf16.msra.mxu0 %v1198
    %1575 = vmatmul.bf16.gmra.mxu0 %v349
    %v1576 = vpop.f32.mrf.mxu0
    %v1577 = vadd.f32 %v1544, %v1576
    %v1578 = vpop.f32.mrf.mxu0
    %v1579 = vadd.f32 %v1546, %v1578
    %1580 = vmatmul.bf16.gmra.mxu0 %v353
    %v1581 = vpop.f32.mrf.mxu0
    %v1582 = vadd.f32 %v1549, %v1581
    %v1583 = vpop.f32.mrf.mxu0
    %v1584 = vadd.f32 %v1551, %v1583
    %1585 = vmatmul.bf16.gmra.mxu0 %v357
    %v1586 = vpop.f32.mrf.mxu0
    %v1587 = vadd.f32 %v1554, %v1586
    %v1588 = vpop.f32.mrf.mxu0
    %v1589 = vadd.f32 %v1556, %v1588
    %1590 = vmatmul.bf16.gmra.mxu0 %v361
    %v1591 = vpop.f32.mrf.mxu0
    %v1592 = vadd.f32 %v1559, %v1591
    %v1593 = vpop.f32.mrf.mxu0
    %v1594 = vadd.f32 %v1561, %v1593
    %1595 = vmatmul.bf16.gmra.mxu0 %v365
    %v1596 = vpop.f32.mrf.mxu0
    %v1597 = vadd.f32 %v1564, %v1596
    %v1598 = vpop.f32.mrf.mxu0
    %1599 = vdwg.mxu0
    %1600 = vmatpush.bf16.msra.mxu0 %v1288
    %1601 = vmatpush.bf16.msra.mxu0 %v1282
    %1602 = vmatpush.bf16.msra.mxu0 %v1276
    %1603 = vmatpush.bf16.msra.mxu0 %v1270
    %1604 = vmatpush.bf16.msra.mxu0 %v1264
    %1605 = vmatpush.bf16.msra.mxu0 %v1258
    %1606 = vmatpush.bf16.msra.mxu0 %v1252
    %1607 = vmatpush.bf16.msra.mxu0 %v1246
    %1608 = vmatmul.bf16.gmra.mxu0 %v350
    %v1609 = vpop.f32.mrf.mxu0
    %v1610 = vadd.f32 %v1577, %v1609
    %v1611 = vpop.f32.mrf.mxu0
    %v1612 = vadd.f32 %v1579, %v1611
    %1613 = vmatmul.bf16.gmra.mxu0 %v354
    %v1614 = vpop.f32.mrf.mxu0
    %v1615 = vadd.f32 %v1582, %v1614
    %v1616 = vpop.f32.mrf.mxu0
    %v1617 = vadd.f32 %v1584, %v1616
    %1618 = vmatmul.bf16.gmra.mxu0 %v358
    %v1619 = vpop.f32.mrf.mxu0
    %v1620 = vadd.f32 %v1587, %v1619
    %v1621 = vpop.f32.mrf.mxu0
    %v1622 = vadd.f32 %v1589, %v1621
    %1623 = vmatmul.bf16.gmra.mxu0 %v362
    %v1624 = vpop.f32.mrf.mxu0
    %v1625 = vadd.f32 %v1592, %v1624
    %v1626 = vpop.f32.mrf.mxu0
    %v1627 = vadd.f32 %v1594, %v1626
    %1628 = vmatmul.bf16.gmra.mxu0 %v366
    %v1629 = vpop.f32.mrf.mxu0
    %v1630 = vadd.f32 %v1597, %v1629
    %v1631 = vpop.f32.mrf.mxu0
    %1632 = vdwg.mxu0
    %1633 = vmatpush.bf16.msra.mxu0 %v1336
    %1634 = vmatpush.bf16.msra.mxu0 %v1330
    %1635 = vmatpush.bf16.msra.mxu0 %v1324
    %1636 = vmatpush.bf16.msra.mxu0 %v1318
    %1637 = vmatpush.bf16.msra.mxu0 %v1312
    %1638 = vmatpush.bf16.msra.mxu0 %v1306
    %1639 = vmatpush.bf16.msra.mxu0 %v1300
    %1640 = vmatpush.bf16.msra.mxu0 %v1294
    %1641 = vmatmul.bf16.gmra.mxu0 %v351
    %v1642 = vpop.f32.mrf.mxu0
    %v1643 = vadd.f32 %v1610, %v1642
    %v1644 = vpop.f32.mrf.mxu0
    %v1645 = vadd.f32 %v1612, %v1644
    %1646 = vmatmul.bf16.gmra.mxu0 %v355
    %v1647 = vpop.f32.mrf.mxu0
    %v1648 = vadd.f32 %v1615, %v1647
    %v1649 = vpop.f32.mrf.mxu0
    %v1650 = vadd.f32 %v1617, %v1649
    %1651 = vmatmul.bf16.gmra.mxu0 %v359
    %v1652 = vpop.f32.mrf.mxu0
    %v1653 = vadd.f32 %v1620, %v1652
    %v1654 = vpop.f32.mrf.mxu0
    %v1655 = vadd.f32 %v1622, %v1654
    %1656 = vmatmul.bf16.gmra.mxu0 %v363
    %v1657 = vpop.f32.mrf.mxu0
    %v1658 = vadd.f32 %v1625, %v1657
    %v1659 = vpop.f32.mrf.mxu0
    %v1660 = vadd.f32 %v1627, %v1659
    %1661 = vmatmul.bf16.gmra.mxu0 %v367
    %v1662 = vpop.f32.mrf.mxu0
    %v1663 = vadd.f32 %v1630, %v1662
    %v1664 = vpop.f32.mrf.mxu0
    %1665 = vdwg.mxu0
    %1666 = vmatpush.bf16.msra.mxu0 %v1193
    %1667 = vmatpush.bf16.msra.mxu0 %v1187
    %1668 = vmatpush.bf16.msra.mxu0 %v1181
    %1669 = vmatpush.bf16.msra.mxu0 %v1175
    %1670 = vmatpush.bf16.msra.mxu0 %v1169
    %1671 = vmatpush.bf16.msra.mxu0 %v1163
    %1672 = vmatpush.bf16.msra.mxu0 %v1157
    %1673 = vmatpush.bf16.msra.mxu0 %v1151
    %1674 = vmatmul.bf16.gmra.mxu0 %v348
    %v1675 = vpop.f32.mrf.mxu0
    %v1676 = vadd.f32 %v563, %v1675
    %v1677 = vpop.f32.mrf.mxu0
    %v1678 = vadd.f32 %v563, %v1677
    %1679 = vmatmul.bf16.gmra.mxu0 %v352
    %v1680 = vpop.f32.mrf.mxu0
    %v1681 = vadd.f32 %v563, %v1680
    %v1682 = vpop.f32.mrf.mxu0
    %v1683 = vadd.f32 %v563, %v1682
    %1684 = vmatmul.bf16.gmra.mxu0 %v356
    %v1685 = vpop.f32.mrf.mxu0
    %v1686 = vadd.f32 %v563, %v1685
    %v1687 = vpop.f32.mrf.mxu0
    %v1688 = vadd.f32 %v563, %v1687
    %1689 = vmatmul.bf16.gmra.mxu0 %v360
    %v1690 = vpop.f32.mrf.mxu0
    %v1691 = vadd.f32 %v563, %v1690
    %v1692 = vpop.f32.mrf.mxu0
    %v1693 = vadd.f32 %v563, %v1692
    %1694 = vmatmul.bf16.gmra.mxu0 %v364
    %v1695 = vpop.f32.mrf.mxu0
    %v1696 = vadd.f32 %v563, %v1695
    %v1697 = vpop.f32.mrf.mxu0
    %1698 = vdwg.mxu0
    %1699 = vmatpush.bf16.msra.mxu0 %v1241
    %1700 = vmatpush.bf16.msra.mxu0 %v1235
    %1701 = vmatpush.bf16.msra.mxu0 %v1229
    %1702 = vmatpush.bf16.msra.mxu0 %v1223
    %1703 = vmatpush.bf16.msra.mxu0 %v1217
    %1704 = vmatpush.bf16.msra.mxu0 %v1211
    %1705 = vmatpush.bf16.msra.mxu0 %v1205
    %1706 = vmatpush.bf16.msra.mxu0 %v1199
    %1707 = vmatmul.bf16.gmra.mxu0 %v349
    %v1708 = vpop.f32.mrf.mxu0
    %v1709 = vadd.f32 %v1676, %v1708
    %v1710 = vpop.f32.mrf.mxu0
    %v1711 = vadd.f32 %v1678, %v1710
    %1712 = vmatmul.bf16.gmra.mxu0 %v353
    %v1713 = vpop.f32.mrf.mxu0
    %v1714 = vadd.f32 %v1681, %v1713
    %v1715 = vpop.f32.mrf.mxu0
    %v1716 = vadd.f32 %v1683, %v1715
    %1717 = vmatmul.bf16.gmra.mxu0 %v357
    %v1718 = vpop.f32.mrf.mxu0
    %v1719 = vadd.f32 %v1686, %v1718
    %v1720 = vpop.f32.mrf.mxu0
    %v1721 = vadd.f32 %v1688, %v1720
    %1722 = vmatmul.bf16.gmra.mxu0 %v361
    %v1723 = vpop.f32.mrf.mxu0
    %v1724 = vadd.f32 %v1691, %v1723
    %v1725 = vpop.f32.mrf.mxu0
    %v1726 = vadd.f32 %v1693, %v1725
    %1727 = vmatmul.bf16.gmra.mxu0 %v365
    %v1728 = vpop.f32.mrf.mxu0
    %v1729 = vadd.f32 %v1696, %v1728
    %v1730 = vpop.f32.mrf.mxu0
    %1731 = vdwg.mxu0
    %1732 = vmatpush.bf16.msra.mxu0 %v1289
    %1733 = vmatpush.bf16.msra.mxu0 %v1283
    %1734 = vmatpush.bf16.msra.mxu0 %v1277
    %1735 = vmatpush.bf16.msra.mxu0 %v1271
    %1736 = vmatpush.bf16.msra.mxu0 %v1265
    %1737 = vmatpush.bf16.msra.mxu0 %v1259
    %1738 = vmatpush.bf16.msra.mxu0 %v1253
    %1739 = vmatpush.bf16.msra.mxu0 %v1247
    %1740 = vmatmul.bf16.gmra.mxu0 %v350
    %v1741 = vpop.f32.mrf.mxu0
    %v1742 = vadd.f32 %v1709, %v1741
    %v1743 = vpop.f32.mrf.mxu0
    %v1744 = vadd.f32 %v1711, %v1743
    %1745 = vmatmul.bf16.gmra.mxu0 %v354
    %v1746 = vpop.f32.mrf.mxu0
    %v1747 = vadd.f32 %v1714, %v1746
    %v1748 = vpop.f32.mrf.mxu0
    %v1749 = vadd.f32 %v1716, %v1748
    %1750 = vmatmul.bf16.gmra.mxu0 %v358
    %v1751 = vpop.f32.mrf.mxu0
    %v1752 = vadd.f32 %v1719, %v1751
    %v1753 = vpop.f32.mrf.mxu0
    %v1754 = vadd.f32 %v1721, %v1753
    %1755 = vmatmul.bf16.gmra.mxu0 %v362
    %v1756 = vpop.f32.mrf.mxu0
    %v1757 = vadd.f32 %v1724, %v1756
    %v1758 = vpop.f32.mrf.mxu0
    %v1759 = vadd.f32 %v1726, %v1758
    %1760 = vmatmul.bf16.gmra.mxu0 %v366
    %v1761 = vpop.f32.mrf.mxu0
    %v1762 = vadd.f32 %v1729, %v1761
    %v1763 = vpop.f32.mrf.mxu0
    %1764 = vdwg.mxu0
    %1765 = vmatpush.bf16.msra.mxu0 %v1337
    %1766 = vmatpush.bf16.msra.mxu0 %v1331
    %1767 = vmatpush.bf16.msra.mxu0 %v1325
    %1768 = vmatpush.bf16.msra.mxu0 %v1319
    %1769 = vmatpush.bf16.msra.mxu0 %v1313
    %1770 = vmatpush.bf16.msra.mxu0 %v1307
    %1771 = vmatpush.bf16.msra.mxu0 %v1301
    %1772 = vmatpush.bf16.msra.mxu0 %v1295
    %1773 = vmatmul.bf16.gmra.mxu0 %v351
    %v1774 = vpop.f32.mrf.mxu0
    %v1775 = vadd.f32 %v1742, %v1774
    %v1776 = vpop.f32.mrf.mxu0
    %v1777 = vadd.f32 %v1744, %v1776
    %1778 = vmatmul.bf16.gmra.mxu0 %v355
    %v1779 = vpop.f32.mrf.mxu0
    %v1780 = vadd.f32 %v1747, %v1779
    %v1781 = vpop.f32.mrf.mxu0
    %v1782 = vadd.f32 %v1749, %v1781
    %1783 = vmatmul.bf16.gmra.mxu0 %v359
    %v1784 = vpop.f32.mrf.mxu0
    %v1785 = vadd.f32 %v1752, %v1784
    %v1786 = vpop.f32.mrf.mxu0
    %v1787 = vadd.f32 %v1754, %v1786
    %1788 = vmatmul.bf16.gmra.mxu0 %v363
    %v1789 = vpop.f32.mrf.mxu0
    %v1790 = vadd.f32 %v1757, %v1789
    %v1791 = vpop.f32.mrf.mxu0
    %v1792 = vadd.f32 %v1759, %v1791
    %1793 = vmatmul.bf16.gmra.mxu0 %v367
    %v1794 = vpop.f32.mrf.mxu0
    %v1795 = vadd.f32 %v1762, %v1794
    %v1796 = vpop.f32.mrf.mxu0
    %1797 = vdwg.mxu0
    %1798 = vmatpush.bf16.msra.mxu0 %v1194
    %1799 = vmatpush.bf16.msra.mxu0 %v1188
    %1800 = vmatpush.bf16.msra.mxu0 %v1182
    %1801 = vmatpush.bf16.msra.mxu0 %v1176
    %1802 = vmatpush.bf16.msra.mxu0 %v1170
    %1803 = vmatpush.bf16.msra.mxu0 %v1164
    %1804 = vmatpush.bf16.msra.mxu0 %v1158
    %1805 = vmatpush.bf16.msra.mxu0 %v1152
    %1806 = vmatmul.bf16.gmra.mxu0 %v348
    %v1807 = vpop.f32.mrf.mxu0
    %v1808 = vadd.f32 %v564, %v1807
    %v1809 = vpop.f32.mrf.mxu0
    %v1810 = vadd.f32 %v564, %v1809
    %1811 = vmatmul.bf16.gmra.mxu0 %v352
    %v1812 = vpop.f32.mrf.mxu0
    %v1813 = vadd.f32 %v564, %v1812
    %v1814 = vpop.f32.mrf.mxu0
    %v1815 = vadd.f32 %v564, %v1814
    %1816 = vmatmul.bf16.gmra.mxu0 %v356
    %v1817 = vpop.f32.mrf.mxu0
    %v1818 = vadd.f32 %v564, %v1817
    %v1819 = vpop.f32.mrf.mxu0
    %v1820 = vadd.f32 %v564, %v1819
    %1821 = vmatmul.bf16.gmra.mxu0 %v360
    %v1822 = vpop.f32.mrf.mxu0
    %v1823 = vadd.f32 %v564, %v1822
    %v1824 = vpop.f32.mrf.mxu0
    %v1825 = vadd.f32 %v564, %v1824
    %1826 = vmatmul.bf16.gmra.mxu0 %v364
    %v1827 = vpop.f32.mrf.mxu0
    %v1828 = vadd.f32 %v564, %v1827
    %v1829 = vpop.f32.mrf.mxu0
    %1830 = vdwg.mxu0
    %1831 = vmatpush.bf16.msra.mxu0 %v1242
    %1832 = vmatpush.bf16.msra.mxu0 %v1236
    %1833 = vmatpush.bf16.msra.mxu0 %v1230
    %1834 = vmatpush.bf16.msra.mxu0 %v1224
    %1835 = vmatpush.bf16.msra.mxu0 %v1218
    %1836 = vmatpush.bf16.msra.mxu0 %v1212
    %1837 = vmatpush.bf16.msra.mxu0 %v1206
    %1838 = vmatpush.bf16.msra.mxu0 %v1200
    %1839 = vmatmul.bf16.gmra.mxu0 %v349
    %v1840 = vpop.f32.mrf.mxu0
    %v1841 = vadd.f32 %v1808, %v1840
    %v1842 = vpop.f32.mrf.mxu0
    %v1843 = vadd.f32 %v1810, %v1842
    %1844 = vmatmul.bf16.gmra.mxu0 %v353
    %v1845 = vpop.f32.mrf.mxu0
    %v1846 = vadd.f32 %v1813, %v1845
    %v1847 = vpop.f32.mrf.mxu0
    %v1848 = vadd.f32 %v1815, %v1847
    %1849 = vmatmul.bf16.gmra.mxu0 %v357
    %v1850 = vpop.f32.mrf.mxu0
    %v1851 = vadd.f32 %v1818, %v1850
    %v1852 = vpop.f32.mrf.mxu0
    %v1853 = vadd.f32 %v1820, %v1852
    %1854 = vmatmul.bf16.gmra.mxu0 %v361
    %v1855 = vpop.f32.mrf.mxu0
    %v1856 = vadd.f32 %v1823, %v1855
    %v1857 = vpop.f32.mrf.mxu0
    %v1858 = vadd.f32 %v1825, %v1857
    %1859 = vmatmul.bf16.gmra.mxu0 %v365
    %v1860 = vpop.f32.mrf.mxu0
    %v1861 = vadd.f32 %v1828, %v1860
    %v1862 = vpop.f32.mrf.mxu0
    %1863 = vdwg.mxu0
    %1864 = vmatpush.bf16.msra.mxu0 %v1290
    %1865 = vmatpush.bf16.msra.mxu0 %v1284
    %1866 = vmatpush.bf16.msra.mxu0 %v1278
    %1867 = vmatpush.bf16.msra.mxu0 %v1272
    %1868 = vmatpush.bf16.msra.mxu0 %v1266
    %1869 = vmatpush.bf16.msra.mxu0 %v1260
    %1870 = vmatpush.bf16.msra.mxu0 %v1254
    %1871 = vmatpush.bf16.msra.mxu0 %v1248
    %1872 = vmatmul.bf16.gmra.mxu0 %v350
    %v1873 = vpop.f32.mrf.mxu0
    %v1874 = vadd.f32 %v1841, %v1873
    %v1875 = vpop.f32.mrf.mxu0
    %v1876 = vadd.f32 %v1843, %v1875
    %1877 = vmatmul.bf16.gmra.mxu0 %v354
    %v1878 = vpop.f32.mrf.mxu0
    %v1879 = vadd.f32 %v1846, %v1878
    %v1880 = vpop.f32.mrf.mxu0
    %v1881 = vadd.f32 %v1848, %v1880
    %1882 = vmatmul.bf16.gmra.mxu0 %v358
    %v1883 = vpop.f32.mrf.mxu0
    %v1884 = vadd.f32 %v1851, %v1883
    %v1885 = vpop.f32.mrf.mxu0
    %v1886 = vadd.f32 %v1853, %v1885
    %1887 = vmatmul.bf16.gmra.mxu0 %v362
    %v1888 = vpop.f32.mrf.mxu0
    %v1889 = vadd.f32 %v1856, %v1888
    %v1890 = vpop.f32.mrf.mxu0
    %v1891 = vadd.f32 %v1858, %v1890
    %1892 = vmatmul.bf16.gmra.mxu0 %v366
    %v1893 = vpop.f32.mrf.mxu0
    %v1894 = vadd.f32 %v1861, %v1893
    %v1895 = vpop.f32.mrf.mxu0
    %1896 = vdwg.mxu0
    %1897 = vmatpush.bf16.msra.mxu0 %v1338
    %1898 = vmatpush.bf16.msra.mxu0 %v1332
    %1899 = vmatpush.bf16.msra.mxu0 %v1326
    %1900 = vmatpush.bf16.msra.mxu0 %v1320
    %1901 = vmatpush.bf16.msra.mxu0 %v1314
    %1902 = vmatpush.bf16.msra.mxu0 %v1308
    %1903 = vmatpush.bf16.msra.mxu0 %v1302
    %1904 = vmatpush.bf16.msra.mxu0 %v1296
    %1905 = vmatmul.bf16.gmra.mxu0 %v351
    %v1906 = vpop.f32.mrf.mxu0
    %v1907 = vadd.f32 %v1874, %v1906
    %v1908 = vpop.f32.mrf.mxu0
    %v1909 = vadd.f32 %v1876, %v1908
    %1910 = vmatmul.bf16.gmra.mxu0 %v355
    %v1911 = vpop.f32.mrf.mxu0
    %v1912 = vadd.f32 %v1879, %v1911
    %v1913 = vpop.f32.mrf.mxu0
    %v1914 = vadd.f32 %v1881, %v1913
    %1915 = vmatmul.bf16.gmra.mxu0 %v359
    %v1916 = vpop.f32.mrf.mxu0
    %v1917 = vadd.f32 %v1884, %v1916
    %v1918 = vpop.f32.mrf.mxu0
    %v1919 = vadd.f32 %v1886, %v1918
    %1920 = vmatmul.bf16.gmra.mxu0 %v363
    %v1921 = vpop.f32.mrf.mxu0
    %v1922 = vadd.f32 %v1889, %v1921
    %v1923 = vpop.f32.mrf.mxu0
    %v1924 = vadd.f32 %v1891, %v1923
    %1925 = vmatmul.bf16.gmra.mxu0 %v367
    %v1926 = vpop.f32.mrf.mxu0
    %v1927 = vadd.f32 %v1894, %v1926
    %v1928 = vpop.f32.mrf.mxu0
    %1929 = vdwg.mxu0
    %1930 = vmatpush.bf16.msra.mxu0 %v1195
    %1931 = vmatpush.bf16.msra.mxu0 %v1189
    %1932 = vmatpush.bf16.msra.mxu0 %v1183
    %1933 = vmatpush.bf16.msra.mxu0 %v1177
    %1934 = vmatpush.bf16.msra.mxu0 %v1171
    %1935 = vmatpush.bf16.msra.mxu0 %v1165
    %1936 = vmatpush.bf16.msra.mxu0 %v1159
    %1937 = vmatpush.bf16.msra.mxu0 %v1153
    %1938 = vmatmul.bf16.gmra.mxu0 %v348
    %v1939 = vpop.f32.mrf.mxu0
    %v1940 = vadd.f32 %v565, %v1939
    %v1941 = vpop.f32.mrf.mxu0
    %v1942 = vadd.f32 %v565, %v1941
    %1943 = vmatmul.bf16.gmra.mxu0 %v352
    %v1944 = vpop.f32.mrf.mxu0
    %v1945 = vadd.f32 %v565, %v1944
    %v1946 = vpop.f32.mrf.mxu0
    %v1947 = vadd.f32 %v565, %v1946
    %1948 = vmatmul.bf16.gmra.mxu0 %v356
    %v1949 = vpop.f32.mrf.mxu0
    %v1950 = vadd.f32 %v565, %v1949
    %v1951 = vpop.f32.mrf.mxu0
    %v1952 = vadd.f32 %v565, %v1951
    %1953 = vmatmul.bf16.gmra.mxu0 %v360
    %v1954 = vpop.f32.mrf.mxu0
    %v1955 = vadd.f32 %v565, %v1954
    %v1956 = vpop.f32.mrf.mxu0
    %v1957 = vadd.f32 %v565, %v1956
    %1958 = vmatmul.bf16.gmra.mxu0 %v364
    %v1959 = vpop.f32.mrf.mxu0
    %v1960 = vadd.f32 %v565, %v1959
    %v1961 = vpop.f32.mrf.mxu0
    %1962 = vdwg.mxu0
    %1963 = vmatpush.bf16.msra.mxu0 %v1243
    %1964 = vmatpush.bf16.msra.mxu0 %v1237
    %1965 = vmatpush.bf16.msra.mxu0 %v1231
    %1966 = vmatpush.bf16.msra.mxu0 %v1225
    %1967 = vmatpush.bf16.msra.mxu0 %v1219
    %1968 = vmatpush.bf16.msra.mxu0 %v1213
    %1969 = vmatpush.bf16.msra.mxu0 %v1207
    %1970 = vmatpush.bf16.msra.mxu0 %v1201
    %1971 = vmatmul.bf16.gmra.mxu0 %v349
    %v1972 = vpop.f32.mrf.mxu0
    %v1973 = vadd.f32 %v1940, %v1972
    %v1974 = vpop.f32.mrf.mxu0
    %v1975 = vadd.f32 %v1942, %v1974
    %1976 = vmatmul.bf16.gmra.mxu0 %v353
    %v1977 = vpop.f32.mrf.mxu0
    %v1978 = vadd.f32 %v1945, %v1977
    %v1979 = vpop.f32.mrf.mxu0
    %v1980 = vadd.f32 %v1947, %v1979
    %1981 = vmatmul.bf16.gmra.mxu0 %v357
    %v1982 = vpop.f32.mrf.mxu0
    %v1983 = vadd.f32 %v1950, %v1982
    %v1984 = vpop.f32.mrf.mxu0
    %v1985 = vadd.f32 %v1952, %v1984
    %1986 = vmatmul.bf16.gmra.mxu0 %v361
    %v1987 = vpop.f32.mrf.mxu0
    %v1988 = vadd.f32 %v1955, %v1987
    %v1989 = vpop.f32.mrf.mxu0
    %v1990 = vadd.f32 %v1957, %v1989
    %1991 = vmatmul.bf16.gmra.mxu0 %v365
    %v1992 = vpop.f32.mrf.mxu0
    %v1993 = vadd.f32 %v1960, %v1992
    %v1994 = vpop.f32.mrf.mxu0
    %1995 = vdwg.mxu0
    %1996 = vmatpush.bf16.msra.mxu0 %v1291
    %1997 = vmatpush.bf16.msra.mxu0 %v1285
    %1998 = vmatpush.bf16.msra.mxu0 %v1279
    %1999 = vmatpush.bf16.msra.mxu0 %v1273
    %2000 = vmatpush.bf16.msra.mxu0 %v1267
    %2001 = vmatpush.bf16.msra.mxu0 %v1261
    %2002 = vmatpush.bf16.msra.mxu0 %v1255
    %2003 = vmatpush.bf16.msra.mxu0 %v1249
    %2004 = vmatmul.bf16.gmra.mxu0 %v350
    %v2005 = vpop.f32.mrf.mxu0
    %v2006 = vadd.f32 %v1973, %v2005
    %v2007 = vpop.f32.mrf.mxu0
    %v2008 = vadd.f32 %v1975, %v2007
    %2009 = vmatmul.bf16.gmra.mxu0 %v354
    %v2010 = vpop.f32.mrf.mxu0
    %v2011 = vadd.f32 %v1978, %v2010
    %v2012 = vpop.f32.mrf.mxu0
    %v2013 = vadd.f32 %v1980, %v2012
    %2014 = vmatmul.bf16.gmra.mxu0 %v358
    %v2015 = vpop.f32.mrf.mxu0
    %v2016 = vadd.f32 %v1983, %v2015
    %v2017 = vpop.f32.mrf.mxu0
    %v2018 = vadd.f32 %v1985, %v2017
    %2019 = vmatmul.bf16.gmra.mxu0 %v362
    %v2020 = vpop.f32.mrf.mxu0
    %v2021 = vadd.f32 %v1988, %v2020
    %v2022 = vpop.f32.mrf.mxu0
    %v2023 = vadd.f32 %v1990, %v2022
    %2024 = vmatmul.bf16.gmra.mxu0 %v366
    %v2025 = vpop.f32.mrf.mxu0
    %v2026 = vadd.f32 %v1993, %v2025
    %v2027 = vpop.f32.mrf.mxu0
    %2028 = vdwg.mxu0
    %2029 = vmatpush.bf16.msra.mxu0 %v1339
    %2030 = vmatpush.bf16.msra.mxu0 %v1333
    %2031 = vmatpush.bf16.msra.mxu0 %v1327
    %2032 = vmatpush.bf16.msra.mxu0 %v1321
    %2033 = vmatpush.bf16.msra.mxu0 %v1315
    %2034 = vmatpush.bf16.msra.mxu0 %v1309
    %2035 = vmatpush.bf16.msra.mxu0 %v1303
    %2036 = vmatpush.bf16.msra.mxu0 %v1297
    %2037 = vmatmul.bf16.gmra.mxu0 %v351
    %v2038 = vpop.f32.mrf.mxu0
    %v2039 = vadd.f32 %v2006, %v2038
    %v2040 = vpop.f32.mrf.mxu0
    %v2041 = vadd.f32 %v2008, %v2040
    %2042 = vmatmul.bf16.gmra.mxu0 %v355
    %v2043 = vpop.f32.mrf.mxu0
    %v2044 = vadd.f32 %v2011, %v2043
    %v2045 = vpop.f32.mrf.mxu0
    %v2046 = vadd.f32 %v2013, %v2045
    %2047 = vmatmul.bf16.gmra.mxu0 %v359
    %v2048 = vpop.f32.mrf.mxu0
    %v2049 = vadd.f32 %v2016, %v2048
    %v2050 = vpop.f32.mrf.mxu0
    %v2051 = vadd.f32 %v2018, %v2050
    %2052 = vmatmul.bf16.gmra.mxu0 %v363
    %v2053 = vpop.f32.mrf.mxu0
    %v2054 = vadd.f32 %v2021, %v2053
    %v2055 = vpop.f32.mrf.mxu0
    %v2056 = vadd.f32 %v2023, %v2055
    %2057 = vmatmul.bf16.gmra.mxu0 %v367
    %v2058 = vpop.f32.mrf.mxu0
    %v2059 = vadd.f32 %v2026, %v2058
    %v2060 = vpop.f32.mrf.mxu0
    %2061 = vdwg.mxu0
    %2062 = vmatpush.bf16.msra.mxu0 %v1196
    %2063 = vmatpush.bf16.msra.mxu0 %v1190
    %2064 = vmatpush.bf16.msra.mxu0 %v1184
    %2065 = vmatpush.bf16.msra.mxu0 %v1178
    %2066 = vmatpush.bf16.msra.mxu0 %v1172
    %2067 = vmatpush.bf16.msra.mxu0 %v1166
    %2068 = vmatpush.bf16.msra.mxu0 %v1160
    %2069 = vmatpush.bf16.msra.mxu0 %v1154
    %2070 = vmatmul.bf16.gmra.mxu0 %v348
    %v2071 = vpop.f32.mrf.mxu0
    %v2072 = vadd.f32 %v566, %v2071
    %v2073 = vpop.f32.mrf.mxu0
    %v2074 = vadd.f32 %v566, %v2073
    %2075 = vmatmul.bf16.gmra.mxu0 %v352
    %v2076 = vpop.f32.mrf.mxu0
    %v2077 = vadd.f32 %v566, %v2076
    %v2078 = vpop.f32.mrf.mxu0
    %v2079 = vadd.f32 %v566, %v2078
    %2080 = vmatmul.bf16.gmra.mxu0 %v356
    %v2081 = vpop.f32.mrf.mxu0
    %v2082 = vadd.f32 %v566, %v2081
    %v2083 = vpop.f32.mrf.mxu0
    %v2084 = vadd.f32 %v566, %v2083
    %2085 = vmatmul.bf16.gmra.mxu0 %v360
    %v2086 = vpop.f32.mrf.mxu0
    %v2087 = vadd.f32 %v566, %v2086
    %v2088 = vpop.f32.mrf.mxu0
    %v2089 = vadd.f32 %v566, %v2088
    %2090 = vmatmul.bf16.gmra.mxu0 %v364
    %v2091 = vpop.f32.mrf.mxu0
    %v2092 = vadd.f32 %v566, %v2091
    %v2093 = vpop.f32.mrf.mxu0
    %2094 = vdwg.mxu0
    %2095 = vmatpush.bf16.msra.mxu0 %v1244
    %2096 = vmatpush.bf16.msra.mxu0 %v1238
    %2097 = vmatpush.bf16.msra.mxu0 %v1232
    %2098 = vmatpush.bf16.msra.mxu0 %v1226
    %2099 = vmatpush.bf16.msra.mxu0 %v1220
    %2100 = vmatpush.bf16.msra.mxu0 %v1214
    %2101 = vmatpush.bf16.msra.mxu0 %v1208
    %2102 = vmatpush.bf16.msra.mxu0 %v1202
    %2103 = vmatmul.bf16.gmra.mxu0 %v349
    %v2104 = vpop.f32.mrf.mxu0
    %v2105 = vadd.f32 %v2072, %v2104
    %v2106 = vpop.f32.mrf.mxu0
    %v2107 = vadd.f32 %v2074, %v2106
    %2108 = vmatmul.bf16.gmra.mxu0 %v353
    %v2109 = vpop.f32.mrf.mxu0
    %v2110 = vadd.f32 %v2077, %v2109
    %v2111 = vpop.f32.mrf.mxu0
    %v2112 = vadd.f32 %v2079, %v2111
    %2113 = vmatmul.bf16.gmra.mxu0 %v357
    %v2114 = vpop.f32.mrf.mxu0
    %v2115 = vadd.f32 %v2082, %v2114
    %v2116 = vpop.f32.mrf.mxu0
    %v2117 = vadd.f32 %v2084, %v2116
    %2118 = vmatmul.bf16.gmra.mxu0 %v361
    %v2119 = vpop.f32.mrf.mxu0
    %v2120 = vadd.f32 %v2087, %v2119
    %v2121 = vpop.f32.mrf.mxu0
    %v2122 = vadd.f32 %v2089, %v2121
    %2123 = vmatmul.bf16.gmra.mxu0 %v365
    %v2124 = vpop.f32.mrf.mxu0
    %v2125 = vadd.f32 %v2092, %v2124
    %v2126 = vpop.f32.mrf.mxu0
    %2127 = vdwg.mxu0
    %2128 = vmatpush.bf16.msra.mxu0 %v1292
    %2129 = vmatpush.bf16.msra.mxu0 %v1286
    %2130 = vmatpush.bf16.msra.mxu0 %v1280
    %2131 = vmatpush.bf16.msra.mxu0 %v1274
    %2132 = vmatpush.bf16.msra.mxu0 %v1268
    %2133 = vmatpush.bf16.msra.mxu0 %v1262
    %2134 = vmatpush.bf16.msra.mxu0 %v1256
    %2135 = vmatpush.bf16.msra.mxu0 %v1250
    %2136 = vmatmul.bf16.gmra.mxu0 %v350
    %v2137 = vpop.f32.mrf.mxu0
    %v2138 = vadd.f32 %v2105, %v2137
    %v2139 = vpop.f32.mrf.mxu0
    %v2140 = vadd.f32 %v2107, %v2139
    %2141 = vmatmul.bf16.gmra.mxu0 %v354
    %v2142 = vpop.f32.mrf.mxu0
    %v2143 = vadd.f32 %v2110, %v2142
    %v2144 = vpop.f32.mrf.mxu0
    %v2145 = vadd.f32 %v2112, %v2144
    %2146 = vmatmul.bf16.gmra.mxu0 %v358
    %v2147 = vpop.f32.mrf.mxu0
    %v2148 = vadd.f32 %v2115, %v2147
    %v2149 = vpop.f32.mrf.mxu0
    %v2150 = vadd.f32 %v2117, %v2149
    %2151 = vmatmul.bf16.gmra.mxu0 %v362
    %v2152 = vpop.f32.mrf.mxu0
    %v2153 = vadd.f32 %v2120, %v2152
    %v2154 = vpop.f32.mrf.mxu0
    %v2155 = vadd.f32 %v2122, %v2154
    %2156 = vmatmul.bf16.gmra.mxu0 %v366
    %v2157 = vpop.f32.mrf.mxu0
    %v2158 = vadd.f32 %v2125, %v2157
    %v2159 = vpop.f32.mrf.mxu0
    %2160 = vdwg.mxu0
    %2161 = vmatpush.bf16.msra.mxu0 %v1340
    %2162 = vmatpush.bf16.msra.mxu0 %v1334
    %2163 = vmatpush.bf16.msra.mxu0 %v1328
    %2164 = vmatpush.bf16.msra.mxu0 %v1322
    %2165 = vmatpush.bf16.msra.mxu0 %v1316
    %2166 = vmatpush.bf16.msra.mxu0 %v1310
    %2167 = vmatpush.bf16.msra.mxu0 %v1304
    %2168 = vmatpush.bf16.msra.mxu0 %v1298
    %2169 = vmatmul.bf16.gmra.mxu0 %v351
    %v2170 = vpop.f32.mrf.mxu0
    %v2171 = vadd.f32 %v2138, %v2170
    %v2172 = vpop.f32.mrf.mxu0
    %v2173 = vadd.f32 %v2140, %v2172
    %2174 = vmatmul.bf16.gmra.mxu0 %v355
    %v2175 = vpop.f32.mrf.mxu0
    %v2176 = vadd.f32 %v2143, %v2175
    %v2177 = vpop.f32.mrf.mxu0
    %v2178 = vadd.f32 %v2145, %v2177
    %2179 = vmatmul.bf16.gmra.mxu0 %v359
    %v2180 = vpop.f32.mrf.mxu0
    %v2181 = vadd.f32 %v2148, %v2180
    %v2182 = vpop.f32.mrf.mxu0
    %v2183 = vadd.f32 %v2150, %v2182
    %2184 = vmatmul.bf16.gmra.mxu0 %v363
    %v2185 = vpop.f32.mrf.mxu0
    %v2186 = vadd.f32 %v2153, %v2185
    %v2187 = vpop.f32.mrf.mxu0
    %v2188 = vadd.f32 %v2155, %v2187
    %2189 = vmatmul.bf16.gmra.mxu0 %v367
    %v2190 = vpop.f32.mrf.mxu0
    %v2191 = vadd.f32 %v2158, %v2190
    %v2192 = vpop.f32.mrf.mxu0
    %2193 = vdwg.mxu0
    %2194 = vmatpush.bf16.msra.mxu0 %v1197
    %2195 = vmatpush.bf16.msra.mxu0 %v1191
    %2196 = vmatpush.bf16.msra.mxu0 %v1185
    %2197 = vmatpush.bf16.msra.mxu0 %v1179
    %2198 = vmatpush.bf16.msra.mxu0 %v1173
    %2199 = vmatpush.bf16.msra.mxu0 %v1167
    %2200 = vmatpush.bf16.msra.mxu0 %v1161
    %2201 = vmatpush.bf16.msra.mxu0 %v1155
    %2202 = vmatmul.bf16.gmra.mxu0 %v348
    %v2203 = vpop.f32.mrf.mxu0
    %v2204 = vadd.f32 %v567, %v2203
    %v2205 = vpop.f32.mrf.mxu0
    %v2206 = vadd.f32 %v567, %v2205
    %2207 = vmatmul.bf16.gmra.mxu0 %v352
    %v2208 = vpop.f32.mrf.mxu0
    %v2209 = vadd.f32 %v567, %v2208
    %v2210 = vpop.f32.mrf.mxu0
    %v2211 = vadd.f32 %v567, %v2210
    %2212 = vmatmul.bf16.gmra.mxu0 %v356
    %v2213 = vpop.f32.mrf.mxu0
    %v2214 = vadd.f32 %v567, %v2213
    %v2215 = vpop.f32.mrf.mxu0
    %v2216 = vadd.f32 %v567, %v2215
    %2217 = vmatmul.bf16.gmra.mxu0 %v360
    %v2218 = vpop.f32.mrf.mxu0
    %v2219 = vadd.f32 %v567, %v2218
    %v2220 = vpop.f32.mrf.mxu0
    %v2221 = vadd.f32 %v567, %v2220
    %2222 = vmatmul.bf16.gmra.mxu0 %v364
    %v2223 = vpop.f32.mrf.mxu0
    %v2224 = vadd.f32 %v567, %v2223
    %v2225 = vpop.f32.mrf.mxu0
    %2226 = vdwg.mxu0
    %2227 = vmatpush.bf16.msra.mxu0 %v1245
    %2228 = vmatpush.bf16.msra.mxu0 %v1239
    %2229 = vmatpush.bf16.msra.mxu0 %v1233
    %2230 = vmatpush.bf16.msra.mxu0 %v1227
    %2231 = vmatpush.bf16.msra.mxu0 %v1221
    %2232 = vmatpush.bf16.msra.mxu0 %v1215
    %2233 = vmatpush.bf16.msra.mxu0 %v1209
    %2234 = vmatpush.bf16.msra.mxu0 %v1203
    %2235 = vmatmul.bf16.gmra.mxu0 %v349
    %v2236 = vpop.f32.mrf.mxu0
    %v2237 = vadd.f32 %v2204, %v2236
    %v2238 = vpop.f32.mrf.mxu0
    %v2239 = vadd.f32 %v2206, %v2238
    %2240 = vmatmul.bf16.gmra.mxu0 %v353
    %v2241 = vpop.f32.mrf.mxu0
    %v2242 = vadd.f32 %v2209, %v2241
    %v2243 = vpop.f32.mrf.mxu0
    %v2244 = vadd.f32 %v2211, %v2243
    %2245 = vmatmul.bf16.gmra.mxu0 %v357
    %v2246 = vpop.f32.mrf.mxu0
    %v2247 = vadd.f32 %v2214, %v2246
    %v2248 = vpop.f32.mrf.mxu0
    %v2249 = vadd.f32 %v2216, %v2248
    %2250 = vmatmul.bf16.gmra.mxu0 %v361
    %v2251 = vpop.f32.mrf.mxu0
    %v2252 = vadd.f32 %v2219, %v2251
    %v2253 = vpop.f32.mrf.mxu0
    %v2254 = vadd.f32 %v2221, %v2253
    %2255 = vmatmul.bf16.gmra.mxu0 %v365
    %v2256 = vpop.f32.mrf.mxu0
    %v2257 = vadd.f32 %v2224, %v2256
    %v2258 = vpop.f32.mrf.mxu0
    %2259 = vdwg.mxu0
    %2260 = vmatpush.bf16.msra.mxu0 %v1293
    %2261 = vmatpush.bf16.msra.mxu0 %v1287
    %2262 = vmatpush.bf16.msra.mxu0 %v1281
    %2263 = vmatpush.bf16.msra.mxu0 %v1275
    %2264 = vmatpush.bf16.msra.mxu0 %v1269
    %2265 = vmatpush.bf16.msra.mxu0 %v1263
    %2266 = vmatpush.bf16.msra.mxu0 %v1257
    %2267 = vmatpush.bf16.msra.mxu0 %v1251
    %2268 = vmatmul.bf16.gmra.mxu0 %v350
    %v2269 = vpop.f32.mrf.mxu0
    %v2270 = vadd.f32 %v2237, %v2269
    %v2271 = vpop.f32.mrf.mxu0
    %v2272 = vadd.f32 %v2239, %v2271
    %2273 = vmatmul.bf16.gmra.mxu0 %v354
    %v2274 = vpop.f32.mrf.mxu0
    %v2275 = vadd.f32 %v2242, %v2274
    %v2276 = vpop.f32.mrf.mxu0
    %v2277 = vadd.f32 %v2244, %v2276
    %2278 = vmatmul.bf16.gmra.mxu0 %v358
    %v2279 = vpop.f32.mrf.mxu0
    %v2280 = vadd.f32 %v2247, %v2279
    %v2281 = vpop.f32.mrf.mxu0
    %v2282 = vadd.f32 %v2249, %v2281
    %2283 = vmatmul.bf16.gmra.mxu0 %v362
    %v2284 = vpop.f32.mrf.mxu0
    %v2285 = vadd.f32 %v2252, %v2284
    %v2286 = vpop.f32.mrf.mxu0
    %v2287 = vadd.f32 %v2254, %v2286
    %2288 = vmatmul.bf16.gmra.mxu0 %v366
    %v2289 = vpop.f32.mrf.mxu0
    %v2290 = vadd.f32 %v2257, %v2289
    %v2291 = vpop.f32.mrf.mxu0
    %2292 = vdwg.mxu0
    %2293 = vmatpush.bf16.msra.mxu0 %v1341
    %2294 = vmatpush.bf16.msra.mxu0 %v1335
    %2295 = vmatpush.bf16.msra.mxu0 %v1329
    %2296 = vmatpush.bf16.msra.mxu0 %v1323
    %2297 = vmatpush.bf16.msra.mxu0 %v1317
    %2298 = vmatpush.bf16.msra.mxu0 %v1311
    %2299 = vmatpush.bf16.msra.mxu0 %v1305
    %2300 = vmatpush.bf16.msra.mxu0 %v1299
    %2301 = vmatmul.bf16.gmra.mxu0 %v351
    %v2302 = vpop.f32.mrf.mxu0
    %v2303 = vadd.f32 %v2270, %v2302
    %v2304 = vpop.f32.mrf.mxu0
    %v2305 = vadd.f32 %v2272, %v2304
    %2306 = vmatmul.bf16.gmra.mxu0 %v355
    %v2307 = vpop.f32.mrf.mxu0
    %v2308 = vadd.f32 %v2275, %v2307
    %v2309 = vpop.f32.mrf.mxu0
    %v2310 = vadd.f32 %v2277, %v2309
    %2311 = vmatmul.bf16.gmra.mxu0 %v359
    %v2312 = vpop.f32.mrf.mxu0
    %v2313 = vadd.f32 %v2280, %v2312
    %v2314 = vpop.f32.mrf.mxu0
    %v2315 = vadd.f32 %v2282, %v2314
    %2316 = vmatmul.bf16.gmra.mxu0 %v363
    %v2317 = vpop.f32.mrf.mxu0
    %v2318 = vadd.f32 %v2285, %v2317
    %v2319 = vpop.f32.mrf.mxu0
    %v2320 = vadd.f32 %v2287, %v2319
    %2321 = vmatmul.bf16.gmra.mxu0 %v367
    %v2322 = vpop.f32.mrf.mxu0
    %v2323 = vadd.f32 %v2290, %v2322
    %v2324 = vpop.f32.mrf.mxu0
    %2325 = vdwg.mxu0
    %v2326 = vxor.u32 %v1643, 2147483648
    %v2327 = vxor.u32 %v1775, 2147483648
    %v2328 = vxor.u32 %v1645, 2147483648
    %v2329 = vxor.u32 %v1777, 2147483648
    %v2330 = vxor.u32 %v1648, 2147483648
    %v2331 = vxor.u32 %v1780, 2147483648
    %v2332 = vxor.u32 %v1650, 2147483648
    %v2333 = vxor.u32 %v1782, 2147483648
    %v2334 = vxor.u32 %v1653, 2147483648
    %v2335 = vxor.u32 %v1785, 2147483648
    %v2336 = vxor.u32 %v1655, 2147483648
    %v2337 = vxor.u32 %v1787, 2147483648
    %v2338 = vxor.u32 %v1658, 2147483648
    %v2339 = vxor.u32 %v1790, 2147483648
    %v2340 = vxor.u32 %v1660, 2147483648
    %v2341 = vxor.u32 %v1792, 2147483648
    %v2342 = vxor.u32 %v1663, 2147483648
    %v2343 = vxor.u32 %v1795, 2147483648
    %v2344 = vmul.f32 %v2326, 1.442695
    %v2345 = vpow.pop %v2344
    %v2346 = vmul.f32 %v2327, 1.442695
    %v2347 = vpow.pop %v2346
    %v2348 = vmul.f32 %v2328, 1.442695
    %v2349 = vpow.pop %v2348
    %v2350 = vmul.f32 %v2329, 1.442695
    %v2351 = vpow.pop %v2350
    %v2352 = vmul.f32 %v2330, 1.442695
    %v2353 = vpow.pop %v2352
    %v2354 = vmul.f32 %v2331, 1.442695
    %v2355 = vpow.pop %v2354
    %v2356 = vmul.f32 %v2332, 1.442695
    %v2357 = vpow.pop %v2356
    %v2358 = vmul.f32 %v2333, 1.442695
    %v2359 = vpow.pop %v2358
    %v2360 = vmul.f32 %v2334, 1.442695
    %v2361 = vpow.pop %v2360
    %v2362 = vmul.f32 %v2335, 1.442695
    %v2363 = vpow.pop %v2362
    %v2364 = vmul.f32 %v2336, 1.442695
    %v2365 = vpow.pop %v2364
    %v2366 = vmul.f32 %v2337, 1.442695
    %v2367 = vpow.pop %v2366
    %v2368 = vmul.f32 %v2338, 1.442695
    %v2369 = vpow.pop %v2368
    %v2370 = vmul.f32 %v2339, 1.442695
    %v2371 = vpow.pop %v2370
    %v2372 = vmul.f32 %v2340, 1.442695
    %v2373 = vpow.pop %v2372
    %v2374 = vmul.f32 %v2341, 1.442695
    %v2375 = vpow.pop %v2374
    %v2376 = vmul.f32 %v2342, 1.442695
    %v2377 = vpow.pop %v2376
    %v2378 = vmul.f32 %v2343, 1.442695
    %v2379 = vpow.pop %v2378
    %v2380 = vadd.f32 %v2345, 1.0
    %v2381 = vadd.f32 %v2347, 1.0
    %v2382 = vadd.f32 %v2349, 1.0
    %v2383 = vadd.f32 %v2351, 1.0
    %v2384 = vadd.f32 %v2353, 1.0
    %v2385 = vadd.f32 %v2355, 1.0
    %v2386 = vadd.f32 %v2357, 1.0
    %v2387 = vadd.f32 %v2359, 1.0
    %v2388 = vadd.f32 %v2361, 1.0
    %v2389 = vadd.f32 %v2363, 1.0
    %v2390 = vadd.f32 %v2365, 1.0
    %v2391 = vadd.f32 %v2367, 1.0
    %v2392 = vadd.f32 %v2369, 1.0
    %v2393 = vadd.f32 %v2371, 1.0
    %v2394 = vadd.f32 %v2373, 1.0
    %v2395 = vadd.f32 %v2375, 1.0
    %v2396 = vadd.f32 %v2377, 1.0
    %v2397 = vadd.f32 %v2379, 1.0
    %v2398 = vrcp.pop %v2380
    %v2399 = vmul.f32 %v2380, %v2398
    %v2400 = vsub.f32 1.0, %v2399
    %v2401 = vmul.f32 %v2398, %v2400
    %v2402 = vadd.f32 %v2398, %v2401
    %vm2403 = vweird.f32 %v2380
    %vm2404 = vweird.f32 %v2398
    %vm2405 = vmor %vm2403, %vm2404
    %v2406 = vsel %vm2405, %v2398, %v2402
    %v2407 = vand.u32 2147483647, %v2380
    %vm2408 = vcmp.eq.f32.partialorder %v2407, 8.507059e+37
    %v2409 = vand.u32 %v2380, 2147483648
    %v2410 = vor.u32 1.1754944e-38, %v2409
    %v2411 = vsel %vm2408, %v2410, %v2406
    %v2412 = vmul.f32 1.0, %v2411
    %v2413 = vrcp.pop %v2381
    %v2414 = vmul.f32 %v2381, %v2413
    %v2415 = vsub.f32 1.0, %v2414
    %v2416 = vmul.f32 %v2413, %v2415
    %v2417 = vadd.f32 %v2413, %v2416
    %vm2418 = vweird.f32 %v2381
    %vm2419 = vweird.f32 %v2413
    %vm2420 = vmor %vm2418, %vm2419
    %v2421 = vsel %vm2420, %v2413, %v2417
    %v2422 = vand.u32 2147483647, %v2381
    %vm2423 = vcmp.eq.f32.partialorder %v2422, 8.507059e+37
    %v2424 = vand.u32 %v2381, 2147483648
    %v2425 = vor.u32 1.1754944e-38, %v2424
    %v2426 = vsel %vm2423, %v2425, %v2421
    %v2427 = vmul.f32 1.0, %v2426
    %v2428 = vrcp.pop %v2382
    %v2429 = vmul.f32 %v2382, %v2428
    %v2430 = vsub.f32 1.0, %v2429
    %v2431 = vmul.f32 %v2428, %v2430
    %v2432 = vadd.f32 %v2428, %v2431
    %vm2433 = vweird.f32 %v2382
    %vm2434 = vweird.f32 %v2428
    %vm2435 = vmor %vm2433, %vm2434
    %v2436 = vsel %vm2435, %v2428, %v2432
    %v2437 = vand.u32 2147483647, %v2382
    %vm2438 = vcmp.eq.f32.partialorder %v2437, 8.507059e+37
    %v2439 = vand.u32 %v2382, 2147483648
    %v2440 = vor.u32 1.1754944e-38, %v2439
    %v2441 = vsel %vm2438, %v2440, %v2436
    %v2442 = vmul.f32 1.0, %v2441
    %v2443 = vrcp.pop %v2383
    %v2444 = vmul.f32 %v2383, %v2443
    %v2445 = vsub.f32 1.0, %v2444
    %v2446 = vmul.f32 %v2443, %v2445
    %v2447 = vadd.f32 %v2443, %v2446
    %vm2448 = vweird.f32 %v2383
    %vm2449 = vweird.f32 %v2443
    %vm2450 = vmor %vm2448, %vm2449
    %v2451 = vsel %vm2450, %v2443, %v2447
    %v2452 = vand.u32 2147483647, %v2383
    %vm2453 = vcmp.eq.f32.partialorder %v2452, 8.507059e+37
    %v2454 = vand.u32 %v2383, 2147483648
    %v2455 = vor.u32 1.1754944e-38, %v2454
    %v2456 = vsel %vm2453, %v2455, %v2451
    %v2457 = vmul.f32 1.0, %v2456
    %v2458 = vrcp.pop %v2384
    %v2459 = vmul.f32 %v2384, %v2458
    %v2460 = vsub.f32 1.0, %v2459
    %v2461 = vmul.f32 %v2458, %v2460
    %v2462 = vadd.f32 %v2458, %v2461
    %vm2463 = vweird.f32 %v2384
    %vm2464 = vweird.f32 %v2458
    %vm2465 = vmor %vm2463, %vm2464
    %v2466 = vsel %vm2465, %v2458, %v2462
    %v2467 = vand.u32 2147483647, %v2384
    %vm2468 = vcmp.eq.f32.partialorder %v2467, 8.507059e+37
    %v2469 = vand.u32 %v2384, 2147483648
    %v2470 = vor.u32 1.1754944e-38, %v2469
    %v2471 = vsel %vm2468, %v2470, %v2466
    %v2472 = vmul.f32 1.0, %v2471
    %v2473 = vrcp.pop %v2385
    %v2474 = vmul.f32 %v2385, %v2473
    %v2475 = vsub.f32 1.0, %v2474
    %v2476 = vmul.f32 %v2473, %v2475
    %v2477 = vadd.f32 %v2473, %v2476
    %vm2478 = vweird.f32 %v2385
    %vm2479 = vweird.f32 %v2473
    %vm2480 = vmor %vm2478, %vm2479
    %v2481 = vsel %vm2480, %v2473, %v2477
    %v2482 = vand.u32 2147483647, %v2385
    %vm2483 = vcmp.eq.f32.partialorder %v2482, 8.507059e+37
    %v2484 = vand.u32 %v2385, 2147483648
    %v2485 = vor.u32 1.1754944e-38, %v2484
    %v2486 = vsel %vm2483, %v2485, %v2481
    %v2487 = vmul.f32 1.0, %v2486
    %v2488 = vrcp.pop %v2386
    %v2489 = vmul.f32 %v2386, %v2488
    %v2490 = vsub.f32 1.0, %v2489
    %v2491 = vmul.f32 %v2488, %v2490
    %v2492 = vadd.f32 %v2488, %v2491
    %vm2493 = vweird.f32 %v2386
    %vm2494 = vweird.f32 %v2488
    %vm2495 = vmor %vm2493, %vm2494
    %v2496 = vsel %vm2495, %v2488, %v2492
    %v2497 = vand.u32 2147483647, %v2386
    %vm2498 = vcmp.eq.f32.partialorder %v2497, 8.507059e+37
    %v2499 = vand.u32 %v2386, 2147483648
    %v2500 = vor.u32 1.1754944e-38, %v2499
    %v2501 = vsel %vm2498, %v2500, %v2496
    %v2502 = vmul.f32 1.0, %v2501
    %v2503 = vrcp.pop %v2387
    %v2504 = vmul.f32 %v2387, %v2503
    %v2505 = vsub.f32 1.0, %v2504
    %v2506 = vmul.f32 %v2503, %v2505
    %v2507 = vadd.f32 %v2503, %v2506
    %vm2508 = vweird.f32 %v2387
    %vm2509 = vweird.f32 %v2503
    %vm2510 = vmor %vm2508, %vm2509
    %v2511 = vsel %vm2510, %v2503, %v2507
    %v2512 = vand.u32 2147483647, %v2387
    %vm2513 = vcmp.eq.f32.partialorder %v2512, 8.507059e+37
    %v2514 = vand.u32 %v2387, 2147483648
    %v2515 = vor.u32 1.1754944e-38, %v2514
    %v2516 = vsel %vm2513, %v2515, %v2511
    %v2517 = vmul.f32 1.0, %v2516
    %v2518 = vrcp.pop %v2388
    %v2519 = vmul.f32 %v2388, %v2518
    %v2520 = vsub.f32 1.0, %v2519
    %v2521 = vmul.f32 %v2518, %v2520
    %v2522 = vadd.f32 %v2518, %v2521
    %vm2523 = vweird.f32 %v2388
    %vm2524 = vweird.f32 %v2518
    %vm2525 = vmor %vm2523, %vm2524
    %v2526 = vsel %vm2525, %v2518, %v2522
    %v2527 = vand.u32 2147483647, %v2388
    %vm2528 = vcmp.eq.f32.partialorder %v2527, 8.507059e+37
    %v2529 = vand.u32 %v2388, 2147483648
    %v2530 = vor.u32 1.1754944e-38, %v2529
    %v2531 = vsel %vm2528, %v2530, %v2526
    %v2532 = vmul.f32 1.0, %v2531
    %v2533 = vrcp.pop %v2389
    %v2534 = vmul.f32 %v2389, %v2533
    %v2535 = vsub.f32 1.0, %v2534
    %v2536 = vmul.f32 %v2533, %v2535
    %v2537 = vadd.f32 %v2533, %v2536
    %vm2538 = vweird.f32 %v2389
    %vm2539 = vweird.f32 %v2533
    %vm2540 = vmor %vm2538, %vm2539
    %v2541 = vsel %vm2540, %v2533, %v2537
    %v2542 = vand.u32 2147483647, %v2389
    %vm2543 = vcmp.eq.f32.partialorder %v2542, 8.507059e+37
    %v2544 = vand.u32 %v2389, 2147483648
    %v2545 = vor.u32 1.1754944e-38, %v2544
    %v2546 = vsel %vm2543, %v2545, %v2541
    %v2547 = vmul.f32 1.0, %v2546
    %v2548 = vrcp.pop %v2390
    %v2549 = vmul.f32 %v2390, %v2548
    %v2550 = vsub.f32 1.0, %v2549
    %v2551 = vmul.f32 %v2548, %v2550
    %v2552 = vadd.f32 %v2548, %v2551
    %vm2553 = vweird.f32 %v2390
    %vm2554 = vweird.f32 %v2548
    %vm2555 = vmor %vm2553, %vm2554
    %v2556 = vsel %vm2555, %v2548, %v2552
    %v2557 = vand.u32 2147483647, %v2390
    %vm2558 = vcmp.eq.f32.partialorder %v2557, 8.507059e+37
    %v2559 = vand.u32 %v2390, 2147483648
    %v2560 = vor.u32 1.1754944e-38, %v2559
    %v2561 = vsel %vm2558, %v2560, %v2556
    %v2562 = vmul.f32 1.0, %v2561
    %v2563 = vrcp.pop %v2391
    %v2564 = vmul.f32 %v2391, %v2563
    %v2565 = vsub.f32 1.0, %v2564
    %v2566 = vmul.f32 %v2563, %v2565
    %v2567 = vadd.f32 %v2563, %v2566
    %vm2568 = vweird.f32 %v2391
    %vm2569 = vweird.f32 %v2563
    %vm2570 = vmor %vm2568, %vm2569
    %v2571 = vsel %vm2570, %v2563, %v2567
    %v2572 = vand.u32 2147483647, %v2391
    %vm2573 = vcmp.eq.f32.partialorder %v2572, 8.507059e+37
    %v2574 = vand.u32 %v2391, 2147483648
    %v2575 = vor.u32 1.1754944e-38, %v2574
    %v2576 = vsel %vm2573, %v2575, %v2571
    %v2577 = vmul.f32 1.0, %v2576
    %v2578 = vrcp.pop %v2392
    %v2579 = vmul.f32 %v2392, %v2578
    %v2580 = vsub.f32 1.0, %v2579
    %v2581 = vmul.f32 %v2578, %v2580
    %v2582 = vadd.f32 %v2578, %v2581
    %vm2583 = vweird.f32 %v2392
    %vm2584 = vweird.f32 %v2578
    %vm2585 = vmor %vm2583, %vm2584
    %v2586 = vsel %vm2585, %v2578, %v2582
    %v2587 = vand.u32 2147483647, %v2392
    %vm2588 = vcmp.eq.f32.partialorder %v2587, 8.507059e+37
    %v2589 = vand.u32 %v2392, 2147483648
    %v2590 = vor.u32 1.1754944e-38, %v2589
    %v2591 = vsel %vm2588, %v2590, %v2586
    %v2592 = vmul.f32 1.0, %v2591
    %v2593 = vrcp.pop %v2393
    %v2594 = vmul.f32 %v2393, %v2593
    %v2595 = vsub.f32 1.0, %v2594
    %v2596 = vmul.f32 %v2593, %v2595
    %v2597 = vadd.f32 %v2593, %v2596
    %vm2598 = vweird.f32 %v2393
    %vm2599 = vweird.f32 %v2593
    %vm2600 = vmor %vm2598, %vm2599
    %v2601 = vsel %vm2600, %v2593, %v2597
    %v2602 = vand.u32 2147483647, %v2393
    %vm2603 = vcmp.eq.f32.partialorder %v2602, 8.507059e+37
    %v2604 = vand.u32 %v2393, 2147483648
    %v2605 = vor.u32 1.1754944e-38, %v2604
    %v2606 = vsel %vm2603, %v2605, %v2601
    %v2607 = vmul.f32 1.0, %v2606
    %v2608 = vrcp.pop %v2394
    %v2609 = vmul.f32 %v2394, %v2608
    %v2610 = vsub.f32 1.0, %v2609
    %v2611 = vmul.f32 %v2608, %v2610
    %v2612 = vadd.f32 %v2608, %v2611
    %vm2613 = vweird.f32 %v2394
    %vm2614 = vweird.f32 %v2608
    %vm2615 = vmor %vm2613, %vm2614
    %v2616 = vsel %vm2615, %v2608, %v2612
    %v2617 = vand.u32 2147483647, %v2394
    %vm2618 = vcmp.eq.f32.partialorder %v2617, 8.507059e+37
    %v2619 = vand.u32 %v2394, 2147483648
    %v2620 = vor.u32 1.1754944e-38, %v2619
    %v2621 = vsel %vm2618, %v2620, %v2616
    %v2622 = vmul.f32 1.0, %v2621
    %v2623 = vrcp.pop %v2395
    %v2624 = vmul.f32 %v2395, %v2623
    %v2625 = vsub.f32 1.0, %v2624
    %v2626 = vmul.f32 %v2623, %v2625
    %v2627 = vadd.f32 %v2623, %v2626
    %vm2628 = vweird.f32 %v2395
    %vm2629 = vweird.f32 %v2623
    %vm2630 = vmor %vm2628, %vm2629
    %v2631 = vsel %vm2630, %v2623, %v2627
    %v2632 = vand.u32 2147483647, %v2395
    %vm2633 = vcmp.eq.f32.partialorder %v2632, 8.507059e+37
    %v2634 = vand.u32 %v2395, 2147483648
    %v2635 = vor.u32 1.1754944e-38, %v2634
    %v2636 = vsel %vm2633, %v2635, %v2631
    %v2637 = vmul.f32 1.0, %v2636
    %v2638 = vrcp.pop %v2396
    %v2639 = vmul.f32 %v2396, %v2638
    %v2640 = vsub.f32 1.0, %v2639
    %v2641 = vmul.f32 %v2638, %v2640
    %v2642 = vadd.f32 %v2638, %v2641
    %vm2643 = vweird.f32 %v2396
    %vm2644 = vweird.f32 %v2638
    %vm2645 = vmor %vm2643, %vm2644
    %v2646 = vsel %vm2645, %v2638, %v2642
    %v2647 = vand.u32 2147483647, %v2396
    %vm2648 = vcmp.eq.f32.partialorder %v2647, 8.507059e+37
    %v2649 = vand.u32 %v2396, 2147483648
    %v2650 = vor.u32 1.1754944e-38, %v2649
    %v2651 = vsel %vm2648, %v2650, %v2646
    %v2652 = vmul.f32 1.0, %v2651
    %v2653 = vrcp.pop %v2397
    %v2654 = vmul.f32 %v2397, %v2653
    %v2655 = vsub.f32 1.0, %v2654
    %v2656 = vmul.f32 %v2653, %v2655
    %v2657 = vadd.f32 %v2653, %v2656
    %vm2658 = vweird.f32 %v2397
    %vm2659 = vweird.f32 %v2653
    %vm2660 = vmor %vm2658, %vm2659
    %v2661 = vsel %vm2660, %v2653, %v2657
    %v2662 = vand.u32 2147483647, %v2397
    %vm2663 = vcmp.eq.f32.partialorder %v2662, 8.507059e+37
    %v2664 = vand.u32 %v2397, 2147483648
    %v2665 = vor.u32 1.1754944e-38, %v2664
    %v2666 = vsel %vm2663, %v2665, %v2661
    %v2667 = vmul.f32 1.0, %v2666
    %v2668 = vtanh.pop %v1907
    %v2669 = vtanh.pop %v2039
    %v2670 = vtanh.pop %v1909
    %v2671 = vtanh.pop %v2041
    %v2672 = vtanh.pop %v1912
    %v2673 = vtanh.pop %v2044
    %v2674 = vtanh.pop %v1914
    %v2675 = vtanh.pop %v2046
    %v2676 = vtanh.pop %v1917
    %v2677 = vtanh.pop %v2049
    %v2678 = vtanh.pop %v1919
    %v2679 = vtanh.pop %v2051
    %v2680 = vtanh.pop %v1922
    %v2681 = vtanh.pop %v2054
    %v2682 = vtanh.pop %v1924
    %v2683 = vtanh.pop %v2056
    %v2684 = vtanh.pop %v1927
    %v2685 = vtanh.pop %v2059
    %v2686 = vxor.u32 %v2171, 2147483648
    %v2687 = vxor.u32 %v2303, 2147483648
    %v2688 = vxor.u32 %v2173, 2147483648
    %v2689 = vxor.u32 %v2305, 2147483648
    %v2690 = vxor.u32 %v2176, 2147483648
    %v2691 = vxor.u32 %v2308, 2147483648
    %v2692 = vxor.u32 %v2178, 2147483648
    %v2693 = vxor.u32 %v2310, 2147483648
    %v2694 = vxor.u32 %v2181, 2147483648
    %v2695 = vxor.u32 %v2313, 2147483648
    %v2696 = vxor.u32 %v2183, 2147483648
    %v2697 = vxor.u32 %v2315, 2147483648
    %v2698 = vxor.u32 %v2186, 2147483648
    %v2699 = vxor.u32 %v2318, 2147483648
    %v2700 = vxor.u32 %v2188, 2147483648
    %v2701 = vxor.u32 %v2320, 2147483648
    %v2702 = vxor.u32 %v2191, 2147483648
    %v2703 = vxor.u32 %v2323, 2147483648
    %v2704 = vmul.f32 %v2686, 1.442695
    %v2705 = vpow.pop %v2704
    %v2706 = vmul.f32 %v2687, 1.442695
    %v2707 = vpow.pop %v2706
    %v2708 = vmul.f32 %v2688, 1.442695
    %v2709 = vpow.pop %v2708
    %v2710 = vmul.f32 %v2689, 1.442695
    %v2711 = vpow.pop %v2710
    %v2712 = vmul.f32 %v2690, 1.442695
    %v2713 = vpow.pop %v2712
    %v2714 = vmul.f32 %v2691, 1.442695
    %v2715 = vpow.pop %v2714
    %v2716 = vmul.f32 %v2692, 1.442695
    %v2717 = vpow.pop %v2716
    %v2718 = vmul.f32 %v2693, 1.442695
    %v2719 = vpow.pop %v2718
    %v2720 = vmul.f32 %v2694, 1.442695
    %v2721 = vpow.pop %v2720
    %v2722 = vmul.f32 %v2695, 1.442695
    %v2723 = vpow.pop %v2722
    %v2724 = vmul.f32 %v2696, 1.442695
    %v2725 = vpow.pop %v2724
    %v2726 = vmul.f32 %v2697, 1.442695
    %v2727 = vpow.pop %v2726
    %v2728 = vmul.f32 %v2698, 1.442695
    %v2729 = vpow.pop %v2728
    %v2730 = vmul.f32 %v2699, 1.442695
    %v2731 = vpow.pop %v2730
    %v2732 = vmul.f32 %v2700, 1.442695
    %v2733 = vpow.pop %v2732
    %v2734 = vmul.f32 %v2701, 1.442695
    %v2735 = vpow.pop %v2734
    %v2736 = vmul.f32 %v2702, 1.442695
    %v2737 = vpow.pop %v2736
    %v2738 = vmul.f32 %v2703, 1.442695
    %v2739 = vpow.pop %v2738
    %v2740 = vadd.f32 %v2705, 1.0
    %v2741 = vadd.f32 %v2707, 1.0
    %v2742 = vadd.f32 %v2709, 1.0
    %v2743 = vadd.f32 %v2711, 1.0
    %v2744 = vadd.f32 %v2713, 1.0
    %v2745 = vadd.f32 %v2715, 1.0
    %v2746 = vadd.f32 %v2717, 1.0
    %v2747 = vadd.f32 %v2719, 1.0
    %v2748 = vadd.f32 %v2721, 1.0
    %v2749 = vadd.f32 %v2723, 1.0
    %v2750 = vadd.f32 %v2725, 1.0
    %v2751 = vadd.f32 %v2727, 1.0
    %v2752 = vadd.f32 %v2729, 1.0
    %v2753 = vadd.f32 %v2731, 1.0
    %v2754 = vadd.f32 %v2733, 1.0
    %v2755 = vadd.f32 %v2735, 1.0
    %v2756 = vadd.f32 %v2737, 1.0
    %v2757 = vadd.f32 %v2739, 1.0
    %v2758 = vrcp.pop %v2740
    %v2759 = vmul.f32 %v2740, %v2758
    %v2760 = vsub.f32 1.0, %v2759
    %v2761 = vmul.f32 %v2758, %v2760
    %v2762 = vadd.f32 %v2758, %v2761
    %vm2763 = vweird.f32 %v2740
    %vm2764 = vweird.f32 %v2758
    %vm2765 = vmor %vm2763, %vm2764
    %v2766 = vsel %vm2765, %v2758, %v2762
    %v2767 = vand.u32 2147483647, %v2740
    %vm2768 = vcmp.eq.f32.partialorder %v2767, 8.507059e+37
    %v2769 = vand.u32 %v2740, 2147483648
    %v2770 = vor.u32 1.1754944e-38, %v2769
    %v2771 = vsel %vm2768, %v2770, %v2766
    %v2772 = vmul.f32 1.0, %v2771
    %v2773 = vrcp.pop %v2741
    %v2774 = vmul.f32 %v2741, %v2773
    %v2775 = vsub.f32 1.0, %v2774
    %v2776 = vmul.f32 %v2773, %v2775
    %v2777 = vadd.f32 %v2773, %v2776
    %vm2778 = vweird.f32 %v2741
    %vm2779 = vweird.f32 %v2773
    %vm2780 = vmor %vm2778, %vm2779
    %v2781 = vsel %vm2780, %v2773, %v2777
    %v2782 = vand.u32 2147483647, %v2741
    %vm2783 = vcmp.eq.f32.partialorder %v2782, 8.507059e+37
    %v2784 = vand.u32 %v2741, 2147483648
    %v2785 = vor.u32 1.1754944e-38, %v2784
    %v2786 = vsel %vm2783, %v2785, %v2781
    %v2787 = vmul.f32 1.0, %v2786
    %v2788 = vrcp.pop %v2742
    %v2789 = vmul.f32 %v2742, %v2788
    %v2790 = vsub.f32 1.0, %v2789
    %v2791 = vmul.f32 %v2788, %v2790
    %v2792 = vadd.f32 %v2788, %v2791
    %vm2793 = vweird.f32 %v2742
    %vm2794 = vweird.f32 %v2788
    %vm2795 = vmor %vm2793, %vm2794
    %v2796 = vsel %vm2795, %v2788, %v2792
    %v2797 = vand.u32 2147483647, %v2742
    %vm2798 = vcmp.eq.f32.partialorder %v2797, 8.507059e+37
    %v2799 = vand.u32 %v2742, 2147483648
    %v2800 = vor.u32 1.1754944e-38, %v2799
    %v2801 = vsel %vm2798, %v2800, %v2796
    %v2802 = vmul.f32 1.0, %v2801
    %v2803 = vrcp.pop %v2743
    %v2804 = vmul.f32 %v2743, %v2803
    %v2805 = vsub.f32 1.0, %v2804
    %v2806 = vmul.f32 %v2803, %v2805
    %v2807 = vadd.f32 %v2803, %v2806
    %vm2808 = vweird.f32 %v2743
    %vm2809 = vweird.f32 %v2803
    %vm2810 = vmor %vm2808, %vm2809
    %v2811 = vsel %vm2810, %v2803, %v2807
    %v2812 = vand.u32 2147483647, %v2743
    %vm2813 = vcmp.eq.f32.partialorder %v2812, 8.507059e+37
    %v2814 = vand.u32 %v2743, 2147483648
    %v2815 = vor.u32 1.1754944e-38, %v2814
    %v2816 = vsel %vm2813, %v2815, %v2811
    %v2817 = vmul.f32 1.0, %v2816
    %v2818 = vrcp.pop %v2744
    %v2819 = vmul.f32 %v2744, %v2818
    %v2820 = vsub.f32 1.0, %v2819
    %v2821 = vmul.f32 %v2818, %v2820
    %v2822 = vadd.f32 %v2818, %v2821
    %vm2823 = vweird.f32 %v2744
    %vm2824 = vweird.f32 %v2818
    %vm2825 = vmor %vm2823, %vm2824
    %v2826 = vsel %vm2825, %v2818, %v2822
    %v2827 = vand.u32 2147483647, %v2744
    %vm2828 = vcmp.eq.f32.partialorder %v2827, 8.507059e+37
    %v2829 = vand.u32 %v2744, 2147483648
    %v2830 = vor.u32 1.1754944e-38, %v2829
    %v2831 = vsel %vm2828, %v2830, %v2826
    %v2832 = vmul.f32 1.0, %v2831
    %v2833 = vrcp.pop %v2745
    %v2834 = vmul.f32 %v2745, %v2833
    %v2835 = vsub.f32 1.0, %v2834
    %v2836 = vmul.f32 %v2833, %v2835
    %v2837 = vadd.f32 %v2833, %v2836
    %vm2838 = vweird.f32 %v2745
    %vm2839 = vweird.f32 %v2833
    %vm2840 = vmor %vm2838, %vm2839
    %v2841 = vsel %vm2840, %v2833, %v2837
    %v2842 = vand.u32 2147483647, %v2745
    %vm2843 = vcmp.eq.f32.partialorder %v2842, 8.507059e+37
    %v2844 = vand.u32 %v2745, 2147483648
    %v2845 = vor.u32 1.1754944e-38, %v2844
    %v2846 = vsel %vm2843, %v2845, %v2841
    %v2847 = vmul.f32 1.0, %v2846
    %v2848 = vrcp.pop %v2746
    %v2849 = vmul.f32 %v2746, %v2848
    %v2850 = vsub.f32 1.0, %v2849
    %v2851 = vmul.f32 %v2848, %v2850
    %v2852 = vadd.f32 %v2848, %v2851
    %vm2853 = vweird.f32 %v2746
    %vm2854 = vweird.f32 %v2848
    %vm2855 = vmor %vm2853, %vm2854
    %v2856 = vsel %vm2855, %v2848, %v2852
    %v2857 = vand.u32 2147483647, %v2746
    %vm2858 = vcmp.eq.f32.partialorder %v2857, 8.507059e+37
    %v2859 = vand.u32 %v2746, 2147483648
    %v2860 = vor.u32 1.1754944e-38, %v2859
    %v2861 = vsel %vm2858, %v2860, %v2856
    %v2862 = vmul.f32 1.0, %v2861
    %v2863 = vrcp.pop %v2747
    %v2864 = vmul.f32 %v2747, %v2863
    %v2865 = vsub.f32 1.0, %v2864
    %v2866 = vmul.f32 %v2863, %v2865
    %v2867 = vadd.f32 %v2863, %v2866
    %vm2868 = vweird.f32 %v2747
    %vm2869 = vweird.f32 %v2863
    %vm2870 = vmor %vm2868, %vm2869
    %v2871 = vsel %vm2870, %v2863, %v2867
    %v2872 = vand.u32 2147483647, %v2747
    %vm2873 = vcmp.eq.f32.partialorder %v2872, 8.507059e+37
    %v2874 = vand.u32 %v2747, 2147483648
    %v2875 = vor.u32 1.1754944e-38, %v2874
    %v2876 = vsel %vm2873, %v2875, %v2871
    %v2877 = vmul.f32 1.0, %v2876
    %v2878 = vrcp.pop %v2748
    %v2879 = vmul.f32 %v2748, %v2878
    %v2880 = vsub.f32 1.0, %v2879
    %v2881 = vmul.f32 %v2878, %v2880
    %v2882 = vadd.f32 %v2878, %v2881
    %vm2883 = vweird.f32 %v2748
    %vm2884 = vweird.f32 %v2878
    %vm2885 = vmor %vm2883, %vm2884
    %v2886 = vsel %vm2885, %v2878, %v2882
    %v2887 = vand.u32 2147483647, %v2748
    %vm2888 = vcmp.eq.f32.partialorder %v2887, 8.507059e+37
    %v2889 = vand.u32 %v2748, 2147483648
    %v2890 = vor.u32 1.1754944e-38, %v2889
    %v2891 = vsel %vm2888, %v2890, %v2886
    %v2892 = vmul.f32 1.0, %v2891
    %v2893 = vrcp.pop %v2749
    %v2894 = vmul.f32 %v2749, %v2893
    %v2895 = vsub.f32 1.0, %v2894
    %v2896 = vmul.f32 %v2893, %v2895
    %v2897 = vadd.f32 %v2893, %v2896
    %vm2898 = vweird.f32 %v2749
    %vm2899 = vweird.f32 %v2893
    %vm2900 = vmor %vm2898, %vm2899
    %v2901 = vsel %vm2900, %v2893, %v2897
    %v2902 = vand.u32 2147483647, %v2749
    %vm2903 = vcmp.eq.f32.partialorder %v2902, 8.507059e+37
    %v2904 = vand.u32 %v2749, 2147483648
    %v2905 = vor.u32 1.1754944e-38, %v2904
    %v2906 = vsel %vm2903, %v2905, %v2901
    %v2907 = vmul.f32 1.0, %v2906
    %v2908 = vrcp.pop %v2750
    %v2909 = vmul.f32 %v2750, %v2908
    %v2910 = vsub.f32 1.0, %v2909
    %v2911 = vmul.f32 %v2908, %v2910
    %v2912 = vadd.f32 %v2908, %v2911
    %vm2913 = vweird.f32 %v2750
    %vm2914 = vweird.f32 %v2908
    %vm2915 = vmor %vm2913, %vm2914
    %v2916 = vsel %vm2915, %v2908, %v2912
    %v2917 = vand.u32 2147483647, %v2750
    %vm2918 = vcmp.eq.f32.partialorder %v2917, 8.507059e+37
    %v2919 = vand.u32 %v2750, 2147483648
    %v2920 = vor.u32 1.1754944e-38, %v2919
    %v2921 = vsel %vm2918, %v2920, %v2916
    %v2922 = vmul.f32 1.0, %v2921
    %v2923 = vrcp.pop %v2751
    %v2924 = vmul.f32 %v2751, %v2923
    %v2925 = vsub.f32 1.0, %v2924
    %v2926 = vmul.f32 %v2923, %v2925
    %v2927 = vadd.f32 %v2923, %v2926
    %vm2928 = vweird.f32 %v2751
    %vm2929 = vweird.f32 %v2923
    %vm2930 = vmor %vm2928, %vm2929
    %v2931 = vsel %vm2930, %v2923, %v2927
    %v2932 = vand.u32 2147483647, %v2751
    %vm2933 = vcmp.eq.f32.partialorder %v2932, 8.507059e+37
    %v2934 = vand.u32 %v2751, 2147483648
    %v2935 = vor.u32 1.1754944e-38, %v2934
    %v2936 = vsel %vm2933, %v2935, %v2931
    %v2937 = vmul.f32 1.0, %v2936
    %v2938 = vrcp.pop %v2752
    %v2939 = vmul.f32 %v2752, %v2938
    %v2940 = vsub.f32 1.0, %v2939
    %v2941 = vmul.f32 %v2938, %v2940
    %v2942 = vadd.f32 %v2938, %v2941
    %vm2943 = vweird.f32 %v2752
    %vm2944 = vweird.f32 %v2938
    %vm2945 = vmor %vm2943, %vm2944
    %v2946 = vsel %vm2945, %v2938, %v2942
    %v2947 = vand.u32 2147483647, %v2752
    %vm2948 = vcmp.eq.f32.partialorder %v2947, 8.507059e+37
    %v2949 = vand.u32 %v2752, 2147483648
    %v2950 = vor.u32 1.1754944e-38, %v2949
    %v2951 = vsel %vm2948, %v2950, %v2946
    %v2952 = vmul.f32 1.0, %v2951
    %v2953 = vrcp.pop %v2753
    %v2954 = vmul.f32 %v2753, %v2953
    %v2955 = vsub.f32 1.0, %v2954
    %v2956 = vmul.f32 %v2953, %v2955
    %v2957 = vadd.f32 %v2953, %v2956
    %vm2958 = vweird.f32 %v2753
    %vm2959 = vweird.f32 %v2953
    %vm2960 = vmor %vm2958, %vm2959
    %v2961 = vsel %vm2960, %v2953, %v2957
    %v2962 = vand.u32 2147483647, %v2753
    %vm2963 = vcmp.eq.f32.partialorder %v2962, 8.507059e+37
    %v2964 = vand.u32 %v2753, 2147483648
    %v2965 = vor.u32 1.1754944e-38, %v2964
    %v2966 = vsel %vm2963, %v2965, %v2961
    %v2967 = vmul.f32 1.0, %v2966
    %v2968 = vrcp.pop %v2754
    %v2969 = vmul.f32 %v2754, %v2968
    %v2970 = vsub.f32 1.0, %v2969
    %v2971 = vmul.f32 %v2968, %v2970
    %v2972 = vadd.f32 %v2968, %v2971
    %vm2973 = vweird.f32 %v2754
    %vm2974 = vweird.f32 %v2968
    %vm2975 = vmor %vm2973, %vm2974
    %v2976 = vsel %vm2975, %v2968, %v2972
    %v2977 = vand.u32 2147483647, %v2754
    %vm2978 = vcmp.eq.f32.partialorder %v2977, 8.507059e+37
    %v2979 = vand.u32 %v2754, 2147483648
    %v2980 = vor.u32 1.1754944e-38, %v2979
    %v2981 = vsel %vm2978, %v2980, %v2976
    %v2982 = vmul.f32 1.0, %v2981
    %v2983 = vrcp.pop %v2755
    %v2984 = vmul.f32 %v2755, %v2983
    %v2985 = vsub.f32 1.0, %v2984
    %v2986 = vmul.f32 %v2983, %v2985
    %v2987 = vadd.f32 %v2983, %v2986
    %vm2988 = vweird.f32 %v2755
    %vm2989 = vweird.f32 %v2983
    %vm2990 = vmor %vm2988, %vm2989
    %v2991 = vsel %vm2990, %v2983, %v2987
    %v2992 = vand.u32 2147483647, %v2755
    %vm2993 = vcmp.eq.f32.partialorder %v2992, 8.507059e+37
    %v2994 = vand.u32 %v2755, 2147483648
    %v2995 = vor.u32 1.1754944e-38, %v2994
    %v2996 = vsel %vm2993, %v2995, %v2991
    %v2997 = vmul.f32 1.0, %v2996
    %v2998 = vrcp.pop %v2756
    %v2999 = vmul.f32 %v2756, %v2998
    %v3000 = vsub.f32 1.0, %v2999
    %v3001 = vmul.f32 %v2998, %v3000
    %v3002 = vadd.f32 %v2998, %v3001
    %vm3003 = vweird.f32 %v2756
    %vm3004 = vweird.f32 %v2998
    %vm3005 = vmor %vm3003, %vm3004
    %v3006 = vsel %vm3005, %v2998, %v3002
    %v3007 = vand.u32 2147483647, %v2756
    %vm3008 = vcmp.eq.f32.partialorder %v3007, 8.507059e+37
    %v3009 = vand.u32 %v2756, 2147483648
    %v3010 = vor.u32 1.1754944e-38, %v3009
    %v3011 = vsel %vm3008, %v3010, %v3006
    %v3012 = vmul.f32 1.0, %v3011
    %v3013 = vrcp.pop %v2757
    %v3014 = vmul.f32 %v2757, %v3013
    %v3015 = vsub.f32 1.0, %v3014
    %v3016 = vmul.f32 %v3013, %v3015
    %v3017 = vadd.f32 %v3013, %v3016
    %vm3018 = vweird.f32 %v2757
    %vm3019 = vweird.f32 %v3013
    %vm3020 = vmor %vm3018, %vm3019
    %v3021 = vsel %vm3020, %v3013, %v3017
    %v3022 = vand.u32 2147483647, %v2757
    %vm3023 = vcmp.eq.f32.partialorder %v3022, 8.507059e+37
    %v3024 = vand.u32 %v2757, 2147483648
    %v3025 = vor.u32 1.1754944e-38, %v3024
    %v3026 = vsel %vm3023, %v3025, %v3021
    %v3027 = vmul.f32 1.0, %v3026
    %v3028 = vmul.f32 %v2412, %v2668
    %v3029 = vmul.f32 %v2427, %v2669
    %v3030 = vmul.f32 %v2442, %v2670
    %v3031 = vmul.f32 %v2457, %v2671
    %v3032 = vmul.f32 %v2472, %v2672
    %v3033 = vmul.f32 %v2487, %v2673
    %v3034 = vmul.f32 %v2502, %v2674
    %v3035 = vmul.f32 %v2517, %v2675
    %v3036 = vmul.f32 %v2532, %v2676
    %v3037 = vmul.f32 %v2547, %v2677
    %v3038 = vmul.f32 %v2562, %v2678
    %v3039 = vmul.f32 %v2577, %v2679
    %v3040 = vmul.f32 %v2592, %v2680
    %v3041 = vmul.f32 %v2607, %v2681
    %v3042 = vmul.f32 %v2622, %v2682
    %v3043 = vmul.f32 %v2637, %v2683
    %v3044 = vmul.f32 %v2652, %v2684
    %v3045 = vmul.f32 %v2667, %v2685
    %v3046 = vtanh.pop %v3028
    %v3047 = vtanh.pop %v3029
    %v3048 = vtanh.pop %v3030
    %v3049 = vtanh.pop %v3031
    %v3050 = vtanh.pop %v3032
    %v3051 = vtanh.pop %v3033
    %v3052 = vtanh.pop %v3034
    %v3053 = vtanh.pop %v3035
    %v3054 = vtanh.pop %v3036
    %v3055 = vtanh.pop %v3037
    %v3056 = vtanh.pop %v3038
    %v3057 = vtanh.pop %v3039
    %v3058 = vtanh.pop %v3040
    %v3059 = vtanh.pop %v3041
    %v3060 = vtanh.pop %v3042
    %v3061 = vtanh.pop %v3043
    %v3062 = vtanh.pop %v3044
    %v3063 = vtanh.pop %v3045
    %v3064 = vmul.f32 %v2772, %v3046
    %v3065 = vmul.f32 %v2787, %v3047
    %v3066 = vmul.f32 %v2802, %v3048
    %v3067 = vmul.f32 %v2817, %v3049
    %v3068 = vmul.f32 %v2832, %v3050
    %v3069 = vmul.f32 %v2847, %v3051
    %v3070 = vmul.f32 %v2862, %v3052
    %v3071 = vmul.f32 %v2877, %v3053
    %v3072 = vmul.f32 %v2892, %v3054
    %v3073 = vmul.f32 %v2907, %v3055
    %v3074 = vmul.f32 %v2922, %v3056
    %v3075 = vmul.f32 %v2937, %v3057
    %v3076 = vmul.f32 %v2952, %v3058
    %v3077 = vmul.f32 %v2967, %v3059
    %v3078 = vmul.f32 %v2982, %v3060
    %v3079 = vmul.f32 %v2997, %v3061
    %v3080 = vmul.f32 %v3012, %v3062
    %v3081 = vmul.f32 %v3027, %v3063
    %v3082 = vld [vmem:[%s5] sm:$0xff]
    %v3083 = vld [vmem:[%s5 + $0x8] sm:$0xff]
    %v3084 = vld [vmem:[%s5 + $0x10] sm:$0xff]
    %v3085 = vld [vmem:[%s5 + $0x18] sm:$0xff]
    %v3086 = vld [vmem:[%s5 + $0x20] sm:$0xff]
    %v3087 = vld [vmem:[%s5 + $0x28] sm:$0xff]
    %v3088 = vld [vmem:[%s5 + $0x30] sm:$0xff]
    %v3089 = vld [vmem:[%s5 + $0x38] sm:$0xff]
    %v3090 = vld [vmem:[%s5 + $0x40] sm:$0xff]
    %v3091 = vld [vmem:[%s5 + $0x48] sm:$0xff]
    %v3092 = vld [vmem:[%s5 + $0x50] sm:$0xff]
    %v3093 = vld [vmem:[%s5 + $0x58] sm:$0xff]
    %v3094 = vld [vmem:[%s5 + $0x60] sm:$0xff]
    %v3095 = vld [vmem:[%s5 + $0x68] sm:$0xff]
    %v3096 = vld [vmem:[%s5 + $0x70] sm:$0xff]
    %v3097 = vld [vmem:[%s5 + $0x78] sm:$0xff]
    %v3098 = vld [vmem:[%s5 + $0x80] sm:$0xff]
    %v3099 = vld [vmem:[%s5 + $0x88] sm:$0xff]
    %v3100 = vld [vmem:[%s5 + $0x90] sm:$0xff]
    %v3101 = vld [vmem:[%s5 + $0x98] sm:$0xff]
    %v3102 = vld [vmem:[%s5 + $0xa0] sm:$0xff]
    %v3103 = vld [vmem:[%s5 + $0xa8] sm:$0xff]
    %v3104 = vld [vmem:[%s5 + $0xb0] sm:$0xff]
    %v3105 = vld [vmem:[%s5 + $0xb8] sm:$0xff]
    %v3106 = vld [vmem:[%s5 + $0xc0] sm:$0xff]
    %v3107 = vld [vmem:[%s5 + $0xc8] sm:$0xff]
    %v3108 = vld [vmem:[%s5 + $0xd0] sm:$0xff]
    %v3109 = vld [vmem:[%s5 + $0xd8] sm:$0xff]
    %v3110 = vld [vmem:[%s5 + $0xe0] sm:$0xff]
    %v3111 = vld [vmem:[%s5 + $0xe8] sm:$0xff]
    %v3112 = vld [vmem:[%s5 + $0xf0] sm:$0xff]
    %v3113 = vld [vmem:[%s5 + $0xf8] sm:$0xff]
    %v3114 = vld [vmem:[%s6] sm:$0x1]
    %v3116 = vperm.slane %v3114, 0
    %3118 = vmatpush.msra.mxu0 %v3097
    %3119 = vmatpush.msra.mxu0 %v3096
    %3120 = vmatpush.msra.mxu0 %v3095
    %3121 = vmatpush.msra.mxu0 %v3094
    %3122 = vmatpush.msra.mxu0 %v3093
    %3123 = vmatpush.msra.mxu0 %v3092
    %3124 = vmatpush.msra.mxu0 %v3091
    %3125 = vmatpush.msra.mxu0 %v3090
    %3126 = vmatpush.msra.mxu0 %v3089
    %3127 = vmatpush.msra.mxu0 %v3088
    %3128 = vmatpush.msra.mxu0 %v3087
    %3129 = vmatpush.msra.mxu0 %v3086
    %3130 = vmatpush.msra.mxu0 %v3085
    %3131 = vmatpush.msra.mxu0 %v3084
    %3132 = vmatpush.msra.mxu0 %v3083
    %3133 = vmatpush.msra.mxu0 %v3082
    %3134 = vmatmul.f32.gmra.mxu0 %v3064
    %v3135 = vpop.f32.mrf.mxu0
    %v3136 = vadd.f32 %v3116, %v3135
    %3137 = vmatmul.f32.gmra.mxu0 %v3066
    %v3138 = vpop.f32.mrf.mxu0
    %v3139 = vadd.f32 %v3116, %v3138
    %3140 = vmatmul.f32.gmra.mxu0 %v3068
    %v3141 = vpop.f32.mrf.mxu0
    %v3142 = vadd.f32 %v3116, %v3141
    %3143 = vmatmul.f32.gmra.mxu0 %v3070
    %v3144 = vpop.f32.mrf.mxu0
    %v3145 = vadd.f32 %v3116, %v3144
    %3146 = vmatmul.f32.gmra.mxu0 %v3072
    %v3147 = vpop.f32.mrf.mxu0
    %v3148 = vadd.f32 %v3116, %v3147
    %3149 = vmatmul.f32.gmra.mxu0 %v3074
    %v3150 = vpop.f32.mrf.mxu0
    %v3151 = vadd.f32 %v3116, %v3150
    %3152 = vmatmul.f32.gmra.mxu0 %v3076
    %v3153 = vpop.f32.mrf.mxu0
    %v3154 = vadd.f32 %v3116, %v3153
    %3155 = vmatmul.f32.gmra.mxu0 %v3078
    %v3156 = vpop.f32.mrf.mxu0
    %v3157 = vadd.f32 %v3116, %v3156
    %3158 = vmatmul.f32.gmra.mxu0 %v3080
    %v3159 = vpop.f32.mrf.mxu0
    %v3160 = vadd.f32 %v3116, %v3159
    %3161 = vdwg.mxu0
    %3162 = vmatpush.msra.mxu0 %v3113
    %3163 = vmatpush.msra.mxu0 %v3112
    %3164 = vmatpush.msra.mxu0 %v3111
    %3165 = vmatpush.msra.mxu0 %v3110
    %3166 = vmatpush.msra.mxu0 %v3109
    %3167 = vmatpush.msra.mxu0 %v3108
    %3168 = vmatpush.msra.mxu0 %v3107
    %3169 = vmatpush.msra.mxu0 %v3106
    %3170 = vmatpush.msra.mxu0 %v3105
    %3171 = vmatpush.msra.mxu0 %v3104
    %3172 = vmatpush.msra.mxu0 %v3103
    %3173 = vmatpush.msra.mxu0 %v3102
    %3174 = vmatpush.msra.mxu0 %v3101
    %3175 = vmatpush.msra.mxu0 %v3100
    %3176 = vmatpush.msra.mxu0 %v3099
    %3177 = vmatpush.msra.mxu0 %v3098
    %3178 = vmatmul.f32.gmra.mxu0 %v3065
    %v3179 = vpop.f32.mrf.mxu0
    %v3180 = vadd.f32 %v3136, %v3179
    %3181 = vmatmul.f32.gmra.mxu0 %v3067
    %v3182 = vpop.f32.mrf.mxu0
    %v3183 = vadd.f32 %v3139, %v3182
    %3184 = vmatmul.f32.gmra.mxu0 %v3069
    %v3185 = vpop.f32.mrf.mxu0
    %v3186 = vadd.f32 %v3142, %v3185
    %3187 = vmatmul.f32.gmra.mxu0 %v3071
    %v3188 = vpop.f32.mrf.mxu0
    %v3189 = vadd.f32 %v3145, %v3188
    %3190 = vmatmul.f32.gmra.mxu0 %v3073
    %v3191 = vpop.f32.mrf.mxu0
    %v3192 = vadd.f32 %v3148, %v3191
    %3193 = vmatmul.f32.gmra.mxu0 %v3075
    %v3194 = vpop.f32.mrf.mxu0
    %v3195 = vadd.f32 %v3151, %v3194
    %3196 = vmatmul.f32.gmra.mxu0 %v3077
    %v3197 = vpop.f32.mrf.mxu0
    %v3198 = vadd.f32 %v3154, %v3197
    %3199 = vmatmul.f32.gmra.mxu0 %v3079
    %v3200 = vpop.f32.mrf.mxu0
    %v3201 = vadd.f32 %v3157, %v3200
    %3202 = vmatmul.f32.gmra.mxu0 %v3081
    %v3203 = vpop.f32.mrf.mxu0
    %v3204 = vadd.f32 %v3160, %v3203
    %3205 = vdwg.mxu0
    %vm3206 = vcmask 15360
    %3207 = vst.msk [vmem:[%s7] sm:$0xff] %vm3206, %v3180
    %3208 = vst.msk [vmem:[%s7 + $0x8] sm:$0xff] %vm3206, %v3183
    %3209 = vst.msk [vmem:[%s7 + $0x10] sm:$0xff] %vm3206, %v3186
    %3210 = vst.msk [vmem:[%s7 + $0x18] sm:$0xff] %vm3206, %v3189
    %3211 = vst.msk [vmem:[%s7 + $0x20] sm:$0xff] %vm3206, %v3192
    %3212 = vst.msk [vmem:[%s7 + $0x28] sm:$0xff] %vm3206, %v3195
    %3213 = vst.msk [vmem:[%s7 + $0x30] sm:$0xff] %vm3206, %v3198
    %3214 = vst.msk [vmem:[%s7 + $0x38] sm:$0xff] %vm3206, %v3201
    %3215 = vst.msk [vmem:[%s7 + $0x40] sm:$0xff] %vm3206, %v3204
    // Predicated region
    $region34: #{tpu_custom_call.1} parent=1 // pred_check
      _
    $region35: #{tpu_custom_call.1} parent=1 // pred_check_branch
      %3217 = sbr.rel (0) target = $region37
    $region36: #{tpu_custom_call.1} parent=1 // pred_region
      _
    $region37: #{tpu_custom_call.1} parent=1 // pred_fallthru
      _
    // Predicated region
    $region38: #{tpu_custom_call.1} parent=1 // pred_check
      _
    $region39: #{tpu_custom_call.1} parent=1 // pred_check_branch
      %3219 = sbr.rel (0) target = $region41
    $region40: #{tpu_custom_call.1} parent=1 // pred_region
      _
    $region41: #{tpu_custom_call.1} parent=1 // pred_fallthru
      _
    %3220 = vsyncpa [#allocation3], 1

</llo_original>
